<compile_context>
chip_gen: v7x
topology: tpu7x:2x2x1
jax: 0.10.0
libtpu: 0.0.40
codegen_flags: <defaults>
</compile_context>

<pallas_src>
import functools

import jax
import jax.numpy as jnp
import numpy as np
from jax.experimental import pallas as pl
from jax.experimental.pallas import tpu as pltpu

# ----------------------- model hyper-parameters (small) ----------------------
EMBEDDING_SIZE = 16
LATENT_SIZE = 8
HIDDEN_SIZE = 32          # -> 4*H = 128, one full lane width (== VOCAB_PAD)
DECODER_LAYERS = 2
VOCAB_SIZE = 48
VOCAB_PAD = 128           # lane-dense output width (sliced back to 48 outside)
BATCH = 2
SEQ = 8


# --------------------------------- kernel ------------------------------------
def make_decoder_kernel(num_layers, seq_len, batch, hidden, emb, latent, vpad):
    H, B, S, L, E, Z = hidden, batch, seq_len, num_layers, emb, latent
    G = 4 * H
    bf16 = jnp.bfloat16
    f32 = jnp.float32

    def kernel(x_ref, z_ref, h0_ref, c0_ref, w_ref, out_ref, hn_ref, cn_ref,
               hbuf_ref):
        # ---- one-time hoists from the packed weight slab (off critical path).
        # Packing order (all row offsets are multiples of 8 -> clean f32 tiles):
        #   [w_ih_x(E); w_ih_z(Z); w_hh0(H); (w_ih_l;w_hh_l)(2H) for l>=1;
        #    fc_w(H); b_0..b_{L-1}; fc_b]
        off = 0
        w_ih_x = w_ref[off:off + E, :].astype(bf16); off += E          # (E,4H)
        w_ih_z = w_ref[off:off + Z, :].astype(bf16); off += Z          # (Z,4H)
        w_hh0 = w_ref[off:off + H, :].astype(bf16); off += H           # (H,4H)
        w_up = []                                                      # fused weights
        for _ in range(L - 1):
            w_up.append(w_ref[off:off + 2 * H, :].astype(bf16)); off += 2 * H
        w_fc = w_ref[off:off + H, :].astype(bf16); off += H            # (H,VPAD)
        b_blk = w_ref[off:off + (L + 1), :]                            # (L+1,4H) f32
        biases = [jnp.broadcast_to(b_blk[l:l + 1, :], (B, G)) for l in range(L)]
        b_fc = jnp.broadcast_to(b_blk[L:L + 1, :], (S * B, vpad))

        # Layer-0 input-gate contributions for all timesteps: one big x matmul
        # plus one tiny z matmul (z contribution is identical for every step),
        # both before the time loop; bf16 operands, f32 accumulate.
        gx0 = jnp.dot(x_ref[...].astype(bf16), w_ih_x,
                      preferred_element_type=f32)                      # (S*B,4H)
        gzb0 = jnp.dot(z_ref[...].astype(bf16), w_ih_z,
                       preferred_element_type=f32) + biases[0]         # (B,4H)

        hs = [h0_ref[l] for l in range(L)]                             # (B,H) f32
        cs = [c0_ref[l] for l in range(L)]

        def lstm_cell(gates, c_prev):
            # 2 whole-gate transcendentals on the (B,4H) vreg (EUP slot),
            # cell math kept in f32.
            sig = jax.nn.sigmoid(gates)
            tnh = jnp.tanh(gates)
            i = sig[:, 0:H]
            f = sig[:, H:2 * H]
            o = sig[:, 3 * H:4 * H]
            g = tnh[:, 2 * H:3 * H]
            c_new = f * c_prev + i * g
            h_new = o * jnp.tanh(c_new)
            return h_new, c_new

        # ---- fully unrolled wavefront over (t, layer) ------------------------
        # layer l / step t depends only on (layer l-1, step t) and
        # (layer l, step t-1) -> serial chain is S + L - 1 steps.
        for t in range(S):
            g0 = (gx0[t * B:(t + 1) * B, :] + gzb0
                  + jnp.dot(hs[0].astype(bf16), w_hh0,
                            preferred_element_type=f32))
            hs[0], cs[0] = lstm_cell(g0, cs[0])
            x_t = hs[0]
            for l in range(1, L):
                # fused single MXU push: concat([x_t, h_prev]) @ [w_ih; w_hh]
                xin = jnp.concatenate([x_t, hs[l]], axis=-1).astype(bf16)  # (B,2H)
                gl = (jnp.dot(xin, w_up[l - 1], preferred_element_type=f32)
                      + biases[l])
                hs[l], cs[l] = lstm_cell(gl, cs[l])
                x_t = hs[l]
            # stash top-layer h; fc is batched after the loop (off the chain)
            hbuf_ref[t * B:(t + 1) * B, :] = x_t

        # ---- dropout (eval-mode identity) + one batched fc matmul ------------
        # TODO(synk): training-mode dropout mask omitted (eval identity).
        # vpad = 128 -> unmasked full-lane stores.
        out_ref[...] = (jnp.dot(hbuf_ref[...].astype(bf16), w_fc,
                                preferred_element_type=f32) + b_fc)    # (S*B,VPAD)

        for l in range(L):
            hn_ref[l] = hs[l]
            cn_ref[l] = cs[l]

    return kernel


# -------------------------------- wrapper ------------------------------------
def _pack_params(params, num_layers, emb, vocab, vpad):
    """Pack every weight/bias into one (rows, 4H==vpad) f32 slab (one DMA)."""
    w_ih0, w_hh0, _ = params["lstm"][0]
    rows = [w_ih0[:emb, :], w_ih0[emb:, :], w_hh0]
    for l in range(1, num_layers):
        w_ih, w_hh, _ = params["lstm"][l]
        rows += [w_ih, w_hh]
    rows.append(jnp.pad(params["fc_w"], ((0, 0), (0, vpad - vocab))))
    rows += [params["lstm"][l][2] for l in range(num_layers)]
    rows.append(jnp.pad(params["fc_b"], ((0, 0), (0, vpad - vocab))))
    return jnp.concatenate(rows, axis=0)


@functools.partial(jax.jit, static_argnames=("num_layers",))
def decoder_forward(x, z, params, h0, c0, *, num_layers=DECODER_LAYERS):
    """x: (B, S, E), z: (B, latent).  Returns (logits (B,S,V), (h_n, c_n))."""
    B, S, E = x.shape
    Z = z.shape[-1]
    H, V, VP = HIDDEN_SIZE, VOCAB_SIZE, VOCAB_PAD
    assert 4 * H == VP  # single packed (rows, 128) weight slab relies on this

    # time-major x on E columns only (no z tile/concat, no (B,S,E+Z) tensor)
    x_flat = jnp.transpose(x, (1, 0, 2)).reshape(S * B, E)

    w_all = _pack_params(params, num_layers, E, V, VP)   # (E+Z+2*H*L+L+1, 128)

    kernel = make_decoder_kernel(num_layers, S, B, H, E, Z, VP)

    out_shapes = (
        jax.ShapeDtypeStruct((S * B, VP), jnp.float32),
        jax.ShapeDtypeStruct((num_layers, B, H), jnp.float32),
        jax.ShapeDtypeStruct((num_layers, B, H), jnp.float32),
    )
    vmem = pltpu.MemorySpace.VMEM
    inputs = (x_flat, z, h0, c0, w_all)
    out_flat, h_n, c_n = pl.pallas_call(
        kernel,
        out_shape=out_shapes,
        in_specs=[pl.BlockSpec(memory_space=vmem) for _ in inputs],
        out_specs=tuple(pl.BlockSpec(memory_space=vmem) for _ in out_shapes),
        scratch_shapes=[pltpu.VMEM((S * B, H), jnp.float32)],  # top-layer h stash
    )(*inputs)

    out = jnp.transpose(out_flat.reshape(S, B, VP), (1, 0, 2))[:, :, :V]
    return out, (h_n, c_n)


# ----------------------------- parameter init --------------------------------
def init_params(key):
    H, E, L, V = HIDDEN_SIZE, EMBEDDING_SIZE, LATENT_SIZE, VOCAB_SIZE
    stdv = 1.0 / np.sqrt(H)
    params = {"lstm": []}
    for layer in range(DECODER_LAYERS):
        din = (E + L) if layer == 0 else H
        key, k1, k2, k3, k4 = jax.random.split(key, 5)
        # stored already transposed: x @ w_ih, h @ w_hh ; PyTorch gate order i,f,g,o
        w_ih = jax.random.uniform(k1, (din, 4 * H), jnp.float32, -stdv, stdv)
        w_hh = jax.random.uniform(k2, (H, 4 * H), jnp.float32, -stdv, stdv)
        b_ih = jax.random.uniform(k3, (4 * H,), jnp.float32, -stdv, stdv)
        b_hh = jax.random.uniform(k4, (4 * H,), jnp.float32, -stdv, stdv)
        params["lstm"].append((w_ih, w_hh, (b_ih + b_hh)[None, :]))
    key, k1, k2 = jax.random.split(key, 3)
    fstd = 1.0 / np.sqrt(H)
    params["fc_w"] = jax.random.uniform(k1, (H, V), jnp.float32, -fstd, fstd)
    params["fc_b"] = jax.random.uniform(k2, (1, V), jnp.float32, -fstd, fstd)
    return params


# --------------------------- pure-JAX reference -------------------------------
def reference_forward(x, z, params, h0, c0, *, mxu_dtype=jnp.float32):
    """Module-semantics reference.
    mxu_dtype=float32  : exact PyTorch-equivalent (eval-mode) forward.
    mxu_dtype=bfloat16 : mirrors the kernel's bf16-MXU-operand / f32-accumulate
                         policy (elementwise/cell math stays f32)."""
    def mm(a, b):
        return jnp.dot(a.astype(mxu_dtype), b.astype(mxu_dtype),
                       preferred_element_type=jnp.float32)

    B, S, _ = x.shape
    H = HIDDEN_SIZE
    z_rep = jnp.broadcast_to(z[:, None, :], (B, S, z.shape[-1]))
    cur = jnp.concatenate([x, z_rep], axis=2)
    hs, cs = [], []
    for layer in range(DECODER_LAYERS):
        w_ih, w_hh, b = params["lstm"][layer]
        h, c = h0[layer], c0[layer]
        outs = []
        for t in range(S):
            g = mm(cur[:, t, :], w_ih) + mm(h, w_hh) + b
            i = jax.nn.sigmoid(g[:, 0:H])
            f = jax.nn.sigmoid(g[:, H:2 * H])
            gg = jnp.tanh(g[:, 2 * H:3 * H])
            o = jax.nn.sigmoid(g[:, 3 * H:4 * H])
            c = f * c + i * gg
            h = o * jnp.tanh(c)
            outs.append(h)
        cur = jnp.stack(outs, axis=1)
        hs.append(h)
        cs.append(c)
    out = (mm(cur.reshape(B * S, H), params["fc_w"]).reshape(B, S, -1)
           + params["fc_b"])
    return out, (jnp.stack(hs), jnp.stack(cs))


# ----------------------------------- main -------------------------------------
if __name__ == "__main__":
    key = jax.random.PRNGKey(0)
    kp, kx, kz = jax.random.split(key, 3)
    params = init_params(kp)

    x = jax.random.normal(kx, (BATCH, SEQ, EMBEDDING_SIZE), jnp.float32)
    z = jax.random.normal(kz, (BATCH, LATENT_SIZE), jnp.float32)

    # init_hidden(batch_size): zeros
    h0 = jnp.zeros((DECODER_LAYERS, BATCH, HIDDEN_SIZE), jnp.float32)
    c0 = jnp.zeros((DECODER_LAYERS, BATCH, HIDDEN_SIZE), jnp.float32)

    out, (h_n, c_n) = decoder_forward(x, z, params, h0, c0)
    out = jax.block_until_ready(out)
    h_n = jax.block_until_ready(h_n)
    c_n = jax.block_until_ready(c_n)

    # (1) matched-precision reference (bf16 MXU operands, f32 accumulate/cell):
    #     tight check of the kernel's structure / gate math / state handling.
    m_out, (m_h, m_c) = reference_forward(x, z, params, h0, c0,
                                          mxu_dtype=jnp.bfloat16)
    np.testing.assert_allclose(np.asarray(out), np.asarray(m_out),
                               rtol=5e-4, atol=5e-4)
    np.testing.assert_allclose(np.asarray(h_n), np.asarray(m_h),
                               rtol=5e-4, atol=5e-4)
    np.testing.assert_allclose(np.asarray(c_n), np.asarray(m_c),
                               rtol=5e-4, atol=5e-4)

    # (2) pure-f32 module-semantics reference: loose check bounding the drift
    #     introduced by bf16 matmul operands (cell math is still f32).
    f_out, (f_h, f_c) = reference_forward(x, z, params, h0, c0,
                                          mxu_dtype=jnp.float32)
    np.testing.assert_allclose(np.asarray(out), np.asarray(f_out),
                               rtol=5e-2, atol=5e-2)
    np.testing.assert_allclose(np.asarray(h_n), np.asarray(f_h),
                               rtol=5e-2, atol=5e-2)
    np.testing.assert_allclose(np.asarray(c_n), np.asarray(f_c),
                               rtol=5e-2, atol=5e-2)

    print("KERNEL_OK")
</pallas_src>

<mosaic_0001>
module attributes {stable_mosaic.version = 11 : i64} {
  func.func @kernel(%arg0: memref<16x16xf32, #tpu.memory_space<vmem>>, %arg1: memref<2x8xf32, #tpu.memory_space<vmem>>, %arg2: memref<2x2x32xf32, #tpu.memory_space<vmem>>, %arg3: memref<2x2x32xf32, #tpu.memory_space<vmem>>, %arg4: memref<155x128xf32, #tpu.memory_space<vmem>>, %arg5: memref<16x128xf32, #tpu.memory_space<vmem>>, %arg6: memref<2x2x32xf32, #tpu.memory_space<vmem>>, %arg7: memref<2x2x32xf32, #tpu.memory_space<vmem>>, %arg8: memref<16x32xf32, #tpu.memory_space<vmem>>) attributes {dimension_semantics = [], scalar_prefetch = 0 : i64, scratch_operands = 1 : i64, tpu.core_type = #tpu.core_type<tc>} {
    %c0 = arith.constant 0 : index
    %c0_0 = arith.constant 0 : index
    %0 = vector.load %arg4[%c0, %c0_0] : memref<155x128xf32, #tpu.memory_space<vmem>>, vector<16x128xf32>
    %1 = arith.truncf %0 : vector<16x128xf32> to vector<16x128xbf16>
    %c16 = arith.constant 16 : index
    %c0_1 = arith.constant 0 : index
    %2 = vector.load %arg4[%c16, %c0_1] : memref<155x128xf32, #tpu.memory_space<vmem>>, vector<8x128xf32>
    %3 = arith.truncf %2 : vector<8x128xf32> to vector<8x128xbf16>
    %c24 = arith.constant 24 : index
    %c0_2 = arith.constant 0 : index
    %4 = vector.load %arg4[%c24, %c0_2] : memref<155x128xf32, #tpu.memory_space<vmem>>, vector<32x128xf32>
    %5 = arith.truncf %4 : vector<32x128xf32> to vector<32x128xbf16>
    %c56 = arith.constant 56 : index
    %c0_3 = arith.constant 0 : index
    %6 = vector.load %arg4[%c56, %c0_3] : memref<155x128xf32, #tpu.memory_space<vmem>>, vector<64x128xf32>
    %7 = arith.truncf %6 : vector<64x128xf32> to vector<64x128xbf16>
    %c120 = arith.constant 120 : index
    %c0_4 = arith.constant 0 : index
    %8 = vector.load %arg4[%c120, %c0_4] : memref<155x128xf32, #tpu.memory_space<vmem>>, vector<32x128xf32>
    %9 = arith.truncf %8 : vector<32x128xf32> to vector<32x128xbf16>
    %c152 = arith.constant 152 : index
    %c0_5 = arith.constant 0 : index
    %10 = vector.load %arg4[%c152, %c0_5] : memref<155x128xf32, #tpu.memory_space<vmem>>, vector<3x128xf32>
    %11 = vector.extract_strided_slice %10 {offsets = [0, 0], sizes = [1, 128], strides = [1, 1]} : vector<3x128xf32> to vector<1x128xf32>
    %12 = vector.shape_cast %11 : vector<1x128xf32> to vector<1x128xf32>
    %13 = vector.broadcast %12 : vector<1x128xf32> to vector<2x128xf32>
    %14 = vector.extract_strided_slice %10 {offsets = [1, 0], sizes = [1, 128], strides = [1, 1]} : vector<3x128xf32> to vector<1x128xf32>
    %15 = vector.shape_cast %14 : vector<1x128xf32> to vector<1x128xf32>
    %16 = vector.broadcast %15 : vector<1x128xf32> to vector<2x128xf32>
    %17 = vector.extract_strided_slice %10 {offsets = [2, 0], sizes = [1, 128], strides = [1, 1]} : vector<3x128xf32> to vector<1x128xf32>
    %18 = vector.shape_cast %17 : vector<1x128xf32> to vector<1x128xf32>
    %19 = vector.broadcast %18 : vector<1x128xf32> to vector<16x128xf32>
    %c0_6 = arith.constant 0 : index
    %c0_7 = arith.constant 0 : index
    %20 = vector.load %arg0[%c0_6, %c0_7] : memref<16x16xf32, #tpu.memory_space<vmem>>, vector<16x16xf32>
    %21 = arith.truncf %20 : vector<16x16xf32> to vector<16x16xbf16>
    %cst = arith.constant dense<0.000000e+00> : vector<16x128xf32>
    %22 = tpu.matmul %21, %1, %cst {dimension_numbers = #tpu.dot_dimension_numbers<[1], [0], [0], [1], [0, 0, 1, 1], [], []>} : vector<16x16xbf16>, vector<16x128xbf16>, vector<16x128xf32> -> vector<16x128xf32>
    %c0_8 = arith.constant 0 : index
    %c0_9 = arith.constant 0 : index
    %23 = vector.load %arg1[%c0_8, %c0_9] : memref<2x8xf32, #tpu.memory_space<vmem>>, vector<2x8xf32>
    %24 = arith.truncf %23 : vector<2x8xf32> to vector<2x8xbf16>
    %cst_10 = arith.constant dense<0.000000e+00> : vector<2x128xf32>
    %25 = tpu.matmul %24, %3, %cst_10 {dimension_numbers = #tpu.dot_dimension_numbers<[1], [0], [0], [1], [0, 0, 1, 1], [], []>} : vector<2x8xbf16>, vector<8x128xbf16>, vector<2x128xf32> -> vector<2x128xf32>
    %26 = arith.addf %25, %13 : vector<2x128xf32>
    %c0_11 = arith.constant 0 : index
    %c0_12 = arith.constant 0 : index
    %c0_13 = arith.constant 0 : index
    %27 = vector.load %arg2[%c0_11, %c0_12, %c0_13] : memref<2x2x32xf32, #tpu.memory_space<vmem>>, vector<1x2x32xf32>
    %28 = vector.shape_cast %27 : vector<1x2x32xf32> to vector<2x32xf32>
    %c1 = arith.constant 1 : index
    %c0_14 = arith.constant 0 : index
    %c0_15 = arith.constant 0 : index
    %29 = vector.load %arg2[%c1, %c0_14, %c0_15] : memref<2x2x32xf32, #tpu.memory_space<vmem>>, vector<1x2x32xf32>
    %30 = vector.shape_cast %29 : vector<1x2x32xf32> to vector<2x32xf32>
    %c0_16 = arith.constant 0 : index
    %c0_17 = arith.constant 0 : index
    %c0_18 = arith.constant 0 : index
    %31 = vector.load %arg3[%c0_16, %c0_17, %c0_18] : memref<2x2x32xf32, #tpu.memory_space<vmem>>, vector<1x2x32xf32>
    %32 = vector.shape_cast %31 : vector<1x2x32xf32> to vector<2x32xf32>
    %c1_19 = arith.constant 1 : index
    %c0_20 = arith.constant 0 : index
    %c0_21 = arith.constant 0 : index
    %33 = vector.load %arg3[%c1_19, %c0_20, %c0_21] : memref<2x2x32xf32, #tpu.memory_space<vmem>>, vector<1x2x32xf32>
    %34 = vector.shape_cast %33 : vector<1x2x32xf32> to vector<2x32xf32>
    %35 = vector.extract_strided_slice %22 {offsets = [0, 0], sizes = [2, 128], strides = [1, 1]} : vector<16x128xf32> to vector<2x128xf32>
    %36 = arith.addf %35, %26 : vector<2x128xf32>
    %37 = arith.truncf %28 : vector<2x32xf32> to vector<2x32xbf16>
    %cst_22 = arith.constant dense<0.000000e+00> : vector<2x128xf32>
    %38 = tpu.matmul %37, %5, %cst_22 {dimension_numbers = #tpu.dot_dimension_numbers<[1], [0], [0], [1], [0, 0, 1, 1], [], []>} : vector<2x32xbf16>, vector<32x128xbf16>, vector<2x128xf32> -> vector<2x128xf32>
    %39 = arith.addf %36, %38 : vector<2x128xf32>
    %40 = arith.negf %39 : vector<2x128xf32>
    %41 = math.exp %40 : vector<2x128xf32>
    %cst_23 = arith.constant 1.000000e+00 : f32
    %42 = vector.broadcast %cst_23 : f32 to vector<2x128xf32>
    %43 = arith.addf %42, %41 : vector<2x128xf32>
    %44 = arith.divf %42, %43 : vector<2x128xf32>
    %45 = math.tanh %39 : vector<2x128xf32>
    %46 = vector.extract_strided_slice %44 {offsets = [0, 0], sizes = [2, 32], strides = [1, 1]} : vector<2x128xf32> to vector<2x32xf32>
    %47 = vector.extract_strided_slice %44 {offsets = [0, 32], sizes = [2, 32], strides = [1, 1]} : vector<2x128xf32> to vector<2x32xf32>
    %48 = vector.extract_strided_slice %44 {offsets = [0, 96], sizes = [2, 32], strides = [1, 1]} : vector<2x128xf32> to vector<2x32xf32>
    %49 = vector.extract_strided_slice %45 {offsets = [0, 64], sizes = [2, 32], strides = [1, 1]} : vector<2x128xf32> to vector<2x32xf32>
    %50 = arith.mulf %47, %32 : vector<2x32xf32>
    %51 = arith.mulf %46, %49 : vector<2x32xf32>
    %52 = arith.addf %50, %51 : vector<2x32xf32>
    %53 = math.tanh %52 : vector<2x32xf32>
    %54 = arith.mulf %48, %53 : vector<2x32xf32>
    %55 = tpu.concatenate %54, %30 in 1 : vector<2x32xf32>, vector<2x32xf32> -> vector<2x64xf32>
    %56 = arith.truncf %55 : vector<2x64xf32> to vector<2x64xbf16>
    %cst_24 = arith.constant dense<0.000000e+00> : vector<2x128xf32>
    %57 = tpu.matmul %56, %7, %cst_24 {dimension_numbers = #tpu.dot_dimension_numbers<[1], [0], [0], [1], [0, 0, 1, 1], [], []>} : vector<2x64xbf16>, vector<64x128xbf16>, vector<2x128xf32> -> vector<2x128xf32>
    %58 = arith.addf %57, %16 : vector<2x128xf32>
    %59 = arith.negf %58 : vector<2x128xf32>
    %60 = math.exp %59 : vector<2x128xf32>
    %cst_25 = arith.constant 1.000000e+00 : f32
    %61 = vector.broadcast %cst_25 : f32 to vector<2x128xf32>
    %62 = arith.addf %61, %60 : vector<2x128xf32>
    %63 = arith.divf %61, %62 : vector<2x128xf32>
    %64 = math.tanh %58 : vector<2x128xf32>
    %65 = vector.extract_strided_slice %63 {offsets = [0, 0], sizes = [2, 32], strides = [1, 1]} : vector<2x128xf32> to vector<2x32xf32>
    %66 = vector.extract_strided_slice %63 {offsets = [0, 32], sizes = [2, 32], strides = [1, 1]} : vector<2x128xf32> to vector<2x32xf32>
    %67 = vector.extract_strided_slice %63 {offsets = [0, 96], sizes = [2, 32], strides = [1, 1]} : vector<2x128xf32> to vector<2x32xf32>
    %68 = vector.extract_strided_slice %64 {offsets = [0, 64], sizes = [2, 32], strides = [1, 1]} : vector<2x128xf32> to vector<2x32xf32>
    %69 = arith.mulf %66, %34 : vector<2x32xf32>
    %70 = arith.mulf %65, %68 : vector<2x32xf32>
    %71 = arith.addf %69, %70 : vector<2x32xf32>
    %72 = math.tanh %71 : vector<2x32xf32>
    %73 = arith.mulf %67, %72 : vector<2x32xf32>
    %c0_26 = arith.constant 0 : index
    %c0_27 = arith.constant 0 : index
    %74 = vector.load %arg8[%c0_26, %c0_27] : memref<16x32xf32, #tpu.memory_space<vmem>>, vector<2x32xf32>
    tpu.vector_store %arg8[%c0_26, %c0_27], %73 {strides = array<i32>} : memref<16x32xf32, #tpu.memory_space<vmem>>, vector<2x32xf32>,
    %75 = vector.extract_strided_slice %22 {offsets = [2, 0], sizes = [2, 128], strides = [1, 1]} : vector<16x128xf32> to vector<2x128xf32>
    %76 = arith.addf %75, %26 : vector<2x128xf32>
    %77 = arith.truncf %54 : vector<2x32xf32> to vector<2x32xbf16>
    %cst_28 = arith.constant dense<0.000000e+00> : vector<2x128xf32>
    %78 = tpu.matmul %77, %5, %cst_28 {dimension_numbers = #tpu.dot_dimension_numbers<[1], [0], [0], [1], [0, 0, 1, 1], [], []>} : vector<2x32xbf16>, vector<32x128xbf16>, vector<2x128xf32> -> vector<2x128xf32>
    %79 = arith.addf %76, %78 : vector<2x128xf32>
    %80 = arith.negf %79 : vector<2x128xf32>
    %81 = math.exp %80 : vector<2x128xf32>
    %cst_29 = arith.constant 1.000000e+00 : f32
    %82 = vector.broadcast %cst_29 : f32 to vector<2x128xf32>
    %83 = arith.addf %82, %81 : vector<2x128xf32>
    %84 = arith.divf %82, %83 : vector<2x128xf32>
    %85 = math.tanh %79 : vector<2x128xf32>
    %86 = vector.extract_strided_slice %84 {offsets = [0, 0], sizes = [2, 32], strides = [1, 1]} : vector<2x128xf32> to vector<2x32xf32>
    %87 = vector.extract_strided_slice %84 {offsets = [0, 32], sizes = [2, 32], strides = [1, 1]} : vector<2x128xf32> to vector<2x32xf32>
    %88 = vector.extract_strided_slice %84 {offsets = [0, 96], sizes = [2, 32], strides = [1, 1]} : vector<2x128xf32> to vector<2x32xf32>
    %89 = vector.extract_strided_slice %85 {offsets = [0, 64], sizes = [2, 32], strides = [1, 1]} : vector<2x128xf32> to vector<2x32xf32>
    %90 = arith.mulf %87, %52 : vector<2x32xf32>
    %91 = arith.mulf %86, %89 : vector<2x32xf32>
    %92 = arith.addf %90, %91 : vector<2x32xf32>
    %93 = math.tanh %92 : vector<2x32xf32>
    %94 = arith.mulf %88, %93 : vector<2x32xf32>
    %95 = tpu.concatenate %94, %73 in 1 : vector<2x32xf32>, vector<2x32xf32> -> vector<2x64xf32>
    %96 = arith.truncf %95 : vector<2x64xf32> to vector<2x64xbf16>
    %cst_30 = arith.constant dense<0.000000e+00> : vector<2x128xf32>
    %97 = tpu.matmul %96, %7, %cst_30 {dimension_numbers = #tpu.dot_dimension_numbers<[1], [0], [0], [1], [0, 0, 1, 1], [], []>} : vector<2x64xbf16>, vector<64x128xbf16>, vector<2x128xf32> -> vector<2x128xf32>
    %98 = arith.addf %97, %16 : vector<2x128xf32>
    %99 = arith.negf %98 : vector<2x128xf32>
    %100 = math.exp %99 : vector<2x128xf32>
    %cst_31 = arith.constant 1.000000e+00 : f32
    %101 = vector.broadcast %cst_31 : f32 to vector<2x128xf32>
    %102 = arith.addf %101, %100 : vector<2x128xf32>
    %103 = arith.divf %101, %102 : vector<2x128xf32>
    %104 = math.tanh %98 : vector<2x128xf32>
    %105 = vector.extract_strided_slice %103 {offsets = [0, 0], sizes = [2, 32], strides = [1, 1]} : vector<2x128xf32> to vector<2x32xf32>
    %106 = vector.extract_strided_slice %103 {offsets = [0, 32], sizes = [2, 32], strides = [1, 1]} : vector<2x128xf32> to vector<2x32xf32>
    %107 = vector.extract_strided_slice %103 {offsets = [0, 96], sizes = [2, 32], strides = [1, 1]} : vector<2x128xf32> to vector<2x32xf32>
    %108 = vector.extract_strided_slice %104 {offsets = [0, 64], sizes = [2, 32], strides = [1, 1]} : vector<2x128xf32> to vector<2x32xf32>
    %109 = arith.mulf %106, %71 : vector<2x32xf32>
    %110 = arith.mulf %105, %108 : vector<2x32xf32>
    %111 = arith.addf %109, %110 : vector<2x32xf32>
    %112 = math.tanh %111 : vector<2x32xf32>
    %113 = arith.mulf %107, %112 : vector<2x32xf32>
    %c2 = arith.constant 2 : index
    %c0_32 = arith.constant 0 : index
    %114 = vector.load %arg8[%c2, %c0_32] : memref<16x32xf32, #tpu.memory_space<vmem>>, vector<2x32xf32>
    tpu.vector_store %arg8[%c2, %c0_32], %113 {strides = array<i32>} : memref<16x32xf32, #tpu.memory_space<vmem>>, vector<2x32xf32>,
    %115 = vector.extract_strided_slice %22 {offsets = [4, 0], sizes = [2, 128], strides = [1, 1]} : vector<16x128xf32> to vector<2x128xf32>
    %116 = arith.addf %115, %26 : vector<2x128xf32>
    %117 = arith.truncf %94 : vector<2x32xf32> to vector<2x32xbf16>
    %cst_33 = arith.constant dense<0.000000e+00> : vector<2x128xf32>
    %118 = tpu.matmul %117, %5, %cst_33 {dimension_numbers = #tpu.dot_dimension_numbers<[1], [0], [0], [1], [0, 0, 1, 1], [], []>} : vector<2x32xbf16>, vector<32x128xbf16>, vector<2x128xf32> -> vector<2x128xf32>
    %119 = arith.addf %116, %118 : vector<2x128xf32>
    %120 = arith.negf %119 : vector<2x128xf32>
    %121 = math.exp %120 : vector<2x128xf32>
    %cst_34 = arith.constant 1.000000e+00 : f32
    %122 = vector.broadcast %cst_34 : f32 to vector<2x128xf32>
    %123 = arith.addf %122, %121 : vector<2x128xf32>
    %124 = arith.divf %122, %123 : vector<2x128xf32>
    %125 = math.tanh %119 : vector<2x128xf32>
    %126 = vector.extract_strided_slice %124 {offsets = [0, 0], sizes = [2, 32], strides = [1, 1]} : vector<2x128xf32> to vector<2x32xf32>
    %127 = vector.extract_strided_slice %124 {offsets = [0, 32], sizes = [2, 32], strides = [1, 1]} : vector<2x128xf32> to vector<2x32xf32>
    %128 = vector.extract_strided_slice %124 {offsets = [0, 96], sizes = [2, 32], strides = [1, 1]} : vector<2x128xf32> to vector<2x32xf32>
    %129 = vector.extract_strided_slice %125 {offsets = [0, 64], sizes = [2, 32], strides = [1, 1]} : vector<2x128xf32> to vector<2x32xf32>
    %130 = arith.mulf %127, %92 : vector<2x32xf32>
    %131 = arith.mulf %126, %129 : vector<2x32xf32>
    %132 = arith.addf %130, %131 : vector<2x32xf32>
    %133 = math.tanh %132 : vector<2x32xf32>
    %134 = arith.mulf %128, %133 : vector<2x32xf32>
    %135 = tpu.concatenate %134, %113 in 1 : vector<2x32xf32>, vector<2x32xf32> -> vector<2x64xf32>
    %136 = arith.truncf %135 : vector<2x64xf32> to vector<2x64xbf16>
    %cst_35 = arith.constant dense<0.000000e+00> : vector<2x128xf32>
    %137 = tpu.matmul %136, %7, %cst_35 {dimension_numbers = #tpu.dot_dimension_numbers<[1], [0], [0], [1], [0, 0, 1, 1], [], []>} : vector<2x64xbf16>, vector<64x128xbf16>, vector<2x128xf32> -> vector<2x128xf32>
    %138 = arith.addf %137, %16 : vector<2x128xf32>
    %139 = arith.negf %138 : vector<2x128xf32>
    %140 = math.exp %139 : vector<2x128xf32>
    %cst_36 = arith.constant 1.000000e+00 : f32
    %141 = vector.broadcast %cst_36 : f32 to vector<2x128xf32>
    %142 = arith.addf %141, %140 : vector<2x128xf32>
    %143 = arith.divf %141, %142 : vector<2x128xf32>
    %144 = math.tanh %138 : vector<2x128xf32>
    %145 = vector.extract_strided_slice %143 {offsets = [0, 0], sizes = [2, 32], strides = [1, 1]} : vector<2x128xf32> to vector<2x32xf32>
    %146 = vector.extract_strided_slice %143 {offsets = [0, 32], sizes = [2, 32], strides = [1, 1]} : vector<2x128xf32> to vector<2x32xf32>
    %147 = vector.extract_strided_slice %143 {offsets = [0, 96], sizes = [2, 32], strides = [1, 1]} : vector<2x128xf32> to vector<2x32xf32>
    %148 = vector.extract_strided_slice %144 {offsets = [0, 64], sizes = [2, 32], strides = [1, 1]} : vector<2x128xf32> to vector<2x32xf32>
    %149 = arith.mulf %146, %111 : vector<2x32xf32>
    %150 = arith.mulf %145, %148 : vector<2x32xf32>
    %151 = arith.addf %149, %150 : vector<2x32xf32>
    %152 = math.tanh %151 : vector<2x32xf32>
    %153 = arith.mulf %147, %152 : vector<2x32xf32>
    %c4 = arith.constant 4 : index
    %c0_37 = arith.constant 0 : index
    %154 = vector.load %arg8[%c4, %c0_37] : memref<16x32xf32, #tpu.memory_space<vmem>>, vector<2x32xf32>
    tpu.vector_store %arg8[%c4, %c0_37], %153 {strides = array<i32>} : memref<16x32xf32, #tpu.memory_space<vmem>>, vector<2x32xf32>,
    %155 = vector.extract_strided_slice %22 {offsets = [6, 0], sizes = [2, 128], strides = [1, 1]} : vector<16x128xf32> to vector<2x128xf32>
    %156 = arith.addf %155, %26 : vector<2x128xf32>
    %157 = arith.truncf %134 : vector<2x32xf32> to vector<2x32xbf16>
    %cst_38 = arith.constant dense<0.000000e+00> : vector<2x128xf32>
    %158 = tpu.matmul %157, %5, %cst_38 {dimension_numbers = #tpu.dot_dimension_numbers<[1], [0], [0], [1], [0, 0, 1, 1], [], []>} : vector<2x32xbf16>, vector<32x128xbf16>, vector<2x128xf32> -> vector<2x128xf32>
    %159 = arith.addf %156, %158 : vector<2x128xf32>
    %160 = arith.negf %159 : vector<2x128xf32>
    %161 = math.exp %160 : vector<2x128xf32>
    %cst_39 = arith.constant 1.000000e+00 : f32
    %162 = vector.broadcast %cst_39 : f32 to vector<2x128xf32>
    %163 = arith.addf %162, %161 : vector<2x128xf32>
    %164 = arith.divf %162, %163 : vector<2x128xf32>
    %165 = math.tanh %159 : vector<2x128xf32>
    %166 = vector.extract_strided_slice %164 {offsets = [0, 0], sizes = [2, 32], strides = [1, 1]} : vector<2x128xf32> to vector<2x32xf32>
    %167 = vector.extract_strided_slice %164 {offsets = [0, 32], sizes = [2, 32], strides = [1, 1]} : vector<2x128xf32> to vector<2x32xf32>
    %168 = vector.extract_strided_slice %164 {offsets = [0, 96], sizes = [2, 32], strides = [1, 1]} : vector<2x128xf32> to vector<2x32xf32>
    %169 = vector.extract_strided_slice %165 {offsets = [0, 64], sizes = [2, 32], strides = [1, 1]} : vector<2x128xf32> to vector<2x32xf32>
    %170 = arith.mulf %167, %132 : vector<2x32xf32>
    %171 = arith.mulf %166, %169 : vector<2x32xf32>
    %172 = arith.addf %170, %171 : vector<2x32xf32>
    %173 = math.tanh %172 : vector<2x32xf32>
    %174 = arith.mulf %168, %173 : vector<2x32xf32>
    %175 = tpu.concatenate %174, %153 in 1 : vector<2x32xf32>, vector<2x32xf32> -> vector<2x64xf32>
    %176 = arith.truncf %175 : vector<2x64xf32> to vector<2x64xbf16>
    %cst_40 = arith.constant dense<0.000000e+00> : vector<2x128xf32>
    %177 = tpu.matmul %176, %7, %cst_40 {dimension_numbers = #tpu.dot_dimension_numbers<[1], [0], [0], [1], [0, 0, 1, 1], [], []>} : vector<2x64xbf16>, vector<64x128xbf16>, vector<2x128xf32> -> vector<2x128xf32>
    %178 = arith.addf %177, %16 : vector<2x128xf32>
    %179 = arith.negf %178 : vector<2x128xf32>
    %180 = math.exp %179 : vector<2x128xf32>
    %cst_41 = arith.constant 1.000000e+00 : f32
    %181 = vector.broadcast %cst_41 : f32 to vector<2x128xf32>
    %182 = arith.addf %181, %180 : vector<2x128xf32>
    %183 = arith.divf %181, %182 : vector<2x128xf32>
    %184 = math.tanh %178 : vector<2x128xf32>
    %185 = vector.extract_strided_slice %183 {offsets = [0, 0], sizes = [2, 32], strides = [1, 1]} : vector<2x128xf32> to vector<2x32xf32>
    %186 = vector.extract_strided_slice %183 {offsets = [0, 32], sizes = [2, 32], strides = [1, 1]} : vector<2x128xf32> to vector<2x32xf32>
    %187 = vector.extract_strided_slice %183 {offsets = [0, 96], sizes = [2, 32], strides = [1, 1]} : vector<2x128xf32> to vector<2x32xf32>
    %188 = vector.extract_strided_slice %184 {offsets = [0, 64], sizes = [2, 32], strides = [1, 1]} : vector<2x128xf32> to vector<2x32xf32>
    %189 = arith.mulf %186, %151 : vector<2x32xf32>
    %190 = arith.mulf %185, %188 : vector<2x32xf32>
    %191 = arith.addf %189, %190 : vector<2x32xf32>
    %192 = math.tanh %191 : vector<2x32xf32>
    %193 = arith.mulf %187, %192 : vector<2x32xf32>
    %c6 = arith.constant 6 : index
    %c0_42 = arith.constant 0 : index
    %194 = vector.load %arg8[%c6, %c0_42] : memref<16x32xf32, #tpu.memory_space<vmem>>, vector<2x32xf32>
    tpu.vector_store %arg8[%c6, %c0_42], %193 {strides = array<i32>} : memref<16x32xf32, #tpu.memory_space<vmem>>, vector<2x32xf32>,
    %195 = vector.extract_strided_slice %22 {offsets = [8, 0], sizes = [2, 128], strides = [1, 1]} : vector<16x128xf32> to vector<2x128xf32>
    %196 = arith.addf %195, %26 : vector<2x128xf32>
    %197 = arith.truncf %174 : vector<2x32xf32> to vector<2x32xbf16>
    %cst_43 = arith.constant dense<0.000000e+00> : vector<2x128xf32>
    %198 = tpu.matmul %197, %5, %cst_43 {dimension_numbers = #tpu.dot_dimension_numbers<[1], [0], [0], [1], [0, 0, 1, 1], [], []>} : vector<2x32xbf16>, vector<32x128xbf16>, vector<2x128xf32> -> vector<2x128xf32>
    %199 = arith.addf %196, %198 : vector<2x128xf32>
    %200 = arith.negf %199 : vector<2x128xf32>
    %201 = math.exp %200 : vector<2x128xf32>
    %cst_44 = arith.constant 1.000000e+00 : f32
    %202 = vector.broadcast %cst_44 : f32 to vector<2x128xf32>
    %203 = arith.addf %202, %201 : vector<2x128xf32>
    %204 = arith.divf %202, %203 : vector<2x128xf32>
    %205 = math.tanh %199 : vector<2x128xf32>
    %206 = vector.extract_strided_slice %204 {offsets = [0, 0], sizes = [2, 32], strides = [1, 1]} : vector<2x128xf32> to vector<2x32xf32>
    %207 = vector.extract_strided_slice %204 {offsets = [0, 32], sizes = [2, 32], strides = [1, 1]} : vector<2x128xf32> to vector<2x32xf32>
    %208 = vector.extract_strided_slice %204 {offsets = [0, 96], sizes = [2, 32], strides = [1, 1]} : vector<2x128xf32> to vector<2x32xf32>
    %209 = vector.extract_strided_slice %205 {offsets = [0, 64], sizes = [2, 32], strides = [1, 1]} : vector<2x128xf32> to vector<2x32xf32>
    %210 = arith.mulf %207, %172 : vector<2x32xf32>
    %211 = arith.mulf %206, %209 : vector<2x32xf32>
    %212 = arith.addf %210, %211 : vector<2x32xf32>
    %213 = math.tanh %212 : vector<2x32xf32>
    %214 = arith.mulf %208, %213 : vector<2x32xf32>
    %215 = tpu.concatenate %214, %193 in 1 : vector<2x32xf32>, vector<2x32xf32> -> vector<2x64xf32>
    %216 = arith.truncf %215 : vector<2x64xf32> to vector<2x64xbf16>
    %cst_45 = arith.constant dense<0.000000e+00> : vector<2x128xf32>
    %217 = tpu.matmul %216, %7, %cst_45 {dimension_numbers = #tpu.dot_dimension_numbers<[1], [0], [0], [1], [0, 0, 1, 1], [], []>} : vector<2x64xbf16>, vector<64x128xbf16>, vector<2x128xf32> -> vector<2x128xf32>
    %218 = arith.addf %217, %16 : vector<2x128xf32>
    %219 = arith.negf %218 : vector<2x128xf32>
    %220 = math.exp %219 : vector<2x128xf32>
    %cst_46 = arith.constant 1.000000e+00 : f32
    %221 = vector.broadcast %cst_46 : f32 to vector<2x128xf32>
    %222 = arith.addf %221, %220 : vector<2x128xf32>
    %223 = arith.divf %221, %222 : vector<2x128xf32>
    %224 = math.tanh %218 : vector<2x128xf32>
    %225 = vector.extract_strided_slice %223 {offsets = [0, 0], sizes = [2, 32], strides = [1, 1]} : vector<2x128xf32> to vector<2x32xf32>
    %226 = vector.extract_strided_slice %223 {offsets = [0, 32], sizes = [2, 32], strides = [1, 1]} : vector<2x128xf32> to vector<2x32xf32>
    %227 = vector.extract_strided_slice %223 {offsets = [0, 96], sizes = [2, 32], strides = [1, 1]} : vector<2x128xf32> to vector<2x32xf32>
    %228 = vector.extract_strided_slice %224 {offsets = [0, 64], sizes = [2, 32], strides = [1, 1]} : vector<2x128xf32> to vector<2x32xf32>
    %229 = arith.mulf %226, %191 : vector<2x32xf32>
    %230 = arith.mulf %225, %228 : vector<2x32xf32>
    %231 = arith.addf %229, %230 : vector<2x32xf32>
    %232 = math.tanh %231 : vector<2x32xf32>
    %233 = arith.mulf %227, %232 : vector<2x32xf32>
    %c8 = arith.constant 8 : index
    %c0_47 = arith.constant 0 : index
    %234 = vector.load %arg8[%c8, %c0_47] : memref<16x32xf32, #tpu.memory_space<vmem>>, vector<2x32xf32>
    tpu.vector_store %arg8[%c8, %c0_47], %233 {strides = array<i32>} : memref<16x32xf32, #tpu.memory_space<vmem>>, vector<2x32xf32>,
    %235 = vector.extract_strided_slice %22 {offsets = [10, 0], sizes = [2, 128], strides = [1, 1]} : vector<16x128xf32> to vector<2x128xf32>
    %236 = arith.addf %235, %26 : vector<2x128xf32>
    %237 = arith.truncf %214 : vector<2x32xf32> to vector<2x32xbf16>
    %cst_48 = arith.constant dense<0.000000e+00> : vector<2x128xf32>
    %238 = tpu.matmul %237, %5, %cst_48 {dimension_numbers = #tpu.dot_dimension_numbers<[1], [0], [0], [1], [0, 0, 1, 1], [], []>} : vector<2x32xbf16>, vector<32x128xbf16>, vector<2x128xf32> -> vector<2x128xf32>
    %239 = arith.addf %236, %238 : vector<2x128xf32>
    %240 = arith.negf %239 : vector<2x128xf32>
    %241 = math.exp %240 : vector<2x128xf32>
    %cst_49 = arith.constant 1.000000e+00 : f32
    %242 = vector.broadcast %cst_49 : f32 to vector<2x128xf32>
    %243 = arith.addf %242, %241 : vector<2x128xf32>
    %244 = arith.divf %242, %243 : vector<2x128xf32>
    %245 = math.tanh %239 : vector<2x128xf32>
    %246 = vector.extract_strided_slice %244 {offsets = [0, 0], sizes = [2, 32], strides = [1, 1]} : vector<2x128xf32> to vector<2x32xf32>
    %247 = vector.extract_strided_slice %244 {offsets = [0, 32], sizes = [2, 32], strides = [1, 1]} : vector<2x128xf32> to vector<2x32xf32>
    %248 = vector.extract_strided_slice %244 {offsets = [0, 96], sizes = [2, 32], strides = [1, 1]} : vector<2x128xf32> to vector<2x32xf32>
    %249 = vector.extract_strided_slice %245 {offsets = [0, 64], sizes = [2, 32], strides = [1, 1]} : vector<2x128xf32> to vector<2x32xf32>
    %250 = arith.mulf %247, %212 : vector<2x32xf32>
    %251 = arith.mulf %246, %249 : vector<2x32xf32>
    %252 = arith.addf %250, %251 : vector<2x32xf32>
    %253 = math.tanh %252 : vector<2x32xf32>
    %254 = arith.mulf %248, %253 : vector<2x32xf32>
    %255 = tpu.concatenate %254, %233 in 1 : vector<2x32xf32>, vector<2x32xf32> -> vector<2x64xf32>
    %256 = arith.truncf %255 : vector<2x64xf32> to vector<2x64xbf16>
    %cst_50 = arith.constant dense<0.000000e+00> : vector<2x128xf32>
    %257 = tpu.matmul %256, %7, %cst_50 {dimension_numbers = #tpu.dot_dimension_numbers<[1], [0], [0], [1], [0, 0, 1, 1], [], []>} : vector<2x64xbf16>, vector<64x128xbf16>, vector<2x128xf32> -> vector<2x128xf32>
    %258 = arith.addf %257, %16 : vector<2x128xf32>
    %259 = arith.negf %258 : vector<2x128xf32>
    %260 = math.exp %259 : vector<2x128xf32>
    %cst_51 = arith.constant 1.000000e+00 : f32
    %261 = vector.broadcast %cst_51 : f32 to vector<2x128xf32>
    %262 = arith.addf %261, %260 : vector<2x128xf32>
    %263 = arith.divf %261, %262 : vector<2x128xf32>
    %264 = math.tanh %258 : vector<2x128xf32>
    %265 = vector.extract_strided_slice %263 {offsets = [0, 0], sizes = [2, 32], strides = [1, 1]} : vector<2x128xf32> to vector<2x32xf32>
    %266 = vector.extract_strided_slice %263 {offsets = [0, 32], sizes = [2, 32], strides = [1, 1]} : vector<2x128xf32> to vector<2x32xf32>
    %267 = vector.extract_strided_slice %263 {offsets = [0, 96], sizes = [2, 32], strides = [1, 1]} : vector<2x128xf32> to vector<2x32xf32>
    %268 = vector.extract_strided_slice %264 {offsets = [0, 64], sizes = [2, 32], strides = [1, 1]} : vector<2x128xf32> to vector<2x32xf32>
    %269 = arith.mulf %266, %231 : vector<2x32xf32>
    %270 = arith.mulf %265, %268 : vector<2x32xf32>
    %271 = arith.addf %269, %270 : vector<2x32xf32>
    %272 = math.tanh %271 : vector<2x32xf32>
    %273 = arith.mulf %267, %272 : vector<2x32xf32>
    %c10 = arith.constant 10 : index
    %c0_52 = arith.constant 0 : index
    %274 = vector.load %arg8[%c10, %c0_52] : memref<16x32xf32, #tpu.memory_space<vmem>>, vector<2x32xf32>
    tpu.vector_store %arg8[%c10, %c0_52], %273 {strides = array<i32>} : memref<16x32xf32, #tpu.memory_space<vmem>>, vector<2x32xf32>,
    %275 = vector.extract_strided_slice %22 {offsets = [12, 0], sizes = [2, 128], strides = [1, 1]} : vector<16x128xf32> to vector<2x128xf32>
    %276 = arith.addf %275, %26 : vector<2x128xf32>
    %277 = arith.truncf %254 : vector<2x32xf32> to vector<2x32xbf16>
    %cst_53 = arith.constant dense<0.000000e+00> : vector<2x128xf32>
    %278 = tpu.matmul %277, %5, %cst_53 {dimension_numbers = #tpu.dot_dimension_numbers<[1], [0], [0], [1], [0, 0, 1, 1], [], []>} : vector<2x32xbf16>, vector<32x128xbf16>, vector<2x128xf32> -> vector<2x128xf32>
    %279 = arith.addf %276, %278 : vector<2x128xf32>
    %280 = arith.negf %279 : vector<2x128xf32>
    %281 = math.exp %280 : vector<2x128xf32>
    %cst_54 = arith.constant 1.000000e+00 : f32
    %282 = vector.broadcast %cst_54 : f32 to vector<2x128xf32>
    %283 = arith.addf %282, %281 : vector<2x128xf32>
    %284 = arith.divf %282, %283 : vector<2x128xf32>
    %285 = math.tanh %279 : vector<2x128xf32>
    %286 = vector.extract_strided_slice %284 {offsets = [0, 0], sizes = [2, 32], strides = [1, 1]} : vector<2x128xf32> to vector<2x32xf32>
    %287 = vector.extract_strided_slice %284 {offsets = [0, 32], sizes = [2, 32], strides = [1, 1]} : vector<2x128xf32> to vector<2x32xf32>
    %288 = vector.extract_strided_slice %284 {offsets = [0, 96], sizes = [2, 32], strides = [1, 1]} : vector<2x128xf32> to vector<2x32xf32>
    %289 = vector.extract_strided_slice %285 {offsets = [0, 64], sizes = [2, 32], strides = [1, 1]} : vector<2x128xf32> to vector<2x32xf32>
    %290 = arith.mulf %287, %252 : vector<2x32xf32>
    %291 = arith.mulf %286, %289 : vector<2x32xf32>
    %292 = arith.addf %290, %291 : vector<2x32xf32>
    %293 = math.tanh %292 : vector<2x32xf32>
    %294 = arith.mulf %288, %293 : vector<2x32xf32>
    %295 = tpu.concatenate %294, %273 in 1 : vector<2x32xf32>, vector<2x32xf32> -> vector<2x64xf32>
    %296 = arith.truncf %295 : vector<2x64xf32> to vector<2x64xbf16>
    %cst_55 = arith.constant dense<0.000000e+00> : vector<2x128xf32>
    %297 = tpu.matmul %296, %7, %cst_55 {dimension_numbers = #tpu.dot_dimension_numbers<[1], [0], [0], [1], [0, 0, 1, 1], [], []>} : vector<2x64xbf16>, vector<64x128xbf16>, vector<2x128xf32> -> vector<2x128xf32>
    %298 = arith.addf %297, %16 : vector<2x128xf32>
    %299 = arith.negf %298 : vector<2x128xf32>
    %300 = math.exp %299 : vector<2x128xf32>
    %cst_56 = arith.constant 1.000000e+00 : f32
    %301 = vector.broadcast %cst_56 : f32 to vector<2x128xf32>
    %302 = arith.addf %301, %300 : vector<2x128xf32>
    %303 = arith.divf %301, %302 : vector<2x128xf32>
    %304 = math.tanh %298 : vector<2x128xf32>
    %305 = vector.extract_strided_slice %303 {offsets = [0, 0], sizes = [2, 32], strides = [1, 1]} : vector<2x128xf32> to vector<2x32xf32>
    %306 = vector.extract_strided_slice %303 {offsets = [0, 32], sizes = [2, 32], strides = [1, 1]} : vector<2x128xf32> to vector<2x32xf32>
    %307 = vector.extract_strided_slice %303 {offsets = [0, 96], sizes = [2, 32], strides = [1, 1]} : vector<2x128xf32> to vector<2x32xf32>
    %308 = vector.extract_strided_slice %304 {offsets = [0, 64], sizes = [2, 32], strides = [1, 1]} : vector<2x128xf32> to vector<2x32xf32>
    %309 = arith.mulf %306, %271 : vector<2x32xf32>
    %310 = arith.mulf %305, %308 : vector<2x32xf32>
    %311 = arith.addf %309, %310 : vector<2x32xf32>
    %312 = math.tanh %311 : vector<2x32xf32>
    %313 = arith.mulf %307, %312 : vector<2x32xf32>
    %c12 = arith.constant 12 : index
    %c0_57 = arith.constant 0 : index
    %314 = vector.load %arg8[%c12, %c0_57] : memref<16x32xf32, #tpu.memory_space<vmem>>, vector<2x32xf32>
    tpu.vector_store %arg8[%c12, %c0_57], %313 {strides = array<i32>} : memref<16x32xf32, #tpu.memory_space<vmem>>, vector<2x32xf32>,
    %315 = vector.extract_strided_slice %22 {offsets = [14, 0], sizes = [2, 128], strides = [1, 1]} : vector<16x128xf32> to vector<2x128xf32>
    %316 = arith.addf %315, %26 : vector<2x128xf32>
    %317 = arith.truncf %294 : vector<2x32xf32> to vector<2x32xbf16>
    %cst_58 = arith.constant dense<0.000000e+00> : vector<2x128xf32>
    %318 = tpu.matmul %317, %5, %cst_58 {dimension_numbers = #tpu.dot_dimension_numbers<[1], [0], [0], [1], [0, 0, 1, 1], [], []>} : vector<2x32xbf16>, vector<32x128xbf16>, vector<2x128xf32> -> vector<2x128xf32>
    %319 = arith.addf %316, %318 : vector<2x128xf32>
    %320 = arith.negf %319 : vector<2x128xf32>
    %321 = math.exp %320 : vector<2x128xf32>
    %cst_59 = arith.constant 1.000000e+00 : f32
    %322 = vector.broadcast %cst_59 : f32 to vector<2x128xf32>
    %323 = arith.addf %322, %321 : vector<2x128xf32>
    %324 = arith.divf %322, %323 : vector<2x128xf32>
    %325 = math.tanh %319 : vector<2x128xf32>
    %326 = vector.extract_strided_slice %324 {offsets = [0, 0], sizes = [2, 32], strides = [1, 1]} : vector<2x128xf32> to vector<2x32xf32>
    %327 = vector.extract_strided_slice %324 {offsets = [0, 32], sizes = [2, 32], strides = [1, 1]} : vector<2x128xf32> to vector<2x32xf32>
    %328 = vector.extract_strided_slice %324 {offsets = [0, 96], sizes = [2, 32], strides = [1, 1]} : vector<2x128xf32> to vector<2x32xf32>
    %329 = vector.extract_strided_slice %325 {offsets = [0, 64], sizes = [2, 32], strides = [1, 1]} : vector<2x128xf32> to vector<2x32xf32>
    %330 = arith.mulf %327, %292 : vector<2x32xf32>
    %331 = arith.mulf %326, %329 : vector<2x32xf32>
    %332 = arith.addf %330, %331 : vector<2x32xf32>
    %333 = math.tanh %332 : vector<2x32xf32>
    %334 = arith.mulf %328, %333 : vector<2x32xf32>
    %335 = tpu.concatenate %334, %313 in 1 : vector<2x32xf32>, vector<2x32xf32> -> vector<2x64xf32>
    %336 = arith.truncf %335 : vector<2x64xf32> to vector<2x64xbf16>
    %cst_60 = arith.constant dense<0.000000e+00> : vector<2x128xf32>
    %337 = tpu.matmul %336, %7, %cst_60 {dimension_numbers = #tpu.dot_dimension_numbers<[1], [0], [0], [1], [0, 0, 1, 1], [], []>} : vector<2x64xbf16>, vector<64x128xbf16>, vector<2x128xf32> -> vector<2x128xf32>
    %338 = arith.addf %337, %16 : vector<2x128xf32>
    %339 = arith.negf %338 : vector<2x128xf32>
    %340 = math.exp %339 : vector<2x128xf32>
    %cst_61 = arith.constant 1.000000e+00 : f32
    %341 = vector.broadcast %cst_61 : f32 to vector<2x128xf32>
    %342 = arith.addf %341, %340 : vector<2x128xf32>
    %343 = arith.divf %341, %342 : vector<2x128xf32>
    %344 = math.tanh %338 : vector<2x128xf32>
    %345 = vector.extract_strided_slice %343 {offsets = [0, 0], sizes = [2, 32], strides = [1, 1]} : vector<2x128xf32> to vector<2x32xf32>
    %346 = vector.extract_strided_slice %343 {offsets = [0, 32], sizes = [2, 32], strides = [1, 1]} : vector<2x128xf32> to vector<2x32xf32>
    %347 = vector.extract_strided_slice %343 {offsets = [0, 96], sizes = [2, 32], strides = [1, 1]} : vector<2x128xf32> to vector<2x32xf32>
    %348 = vector.extract_strided_slice %344 {offsets = [0, 64], sizes = [2, 32], strides = [1, 1]} : vector<2x128xf32> to vector<2x32xf32>
    %349 = arith.mulf %346, %311 : vector<2x32xf32>
    %350 = arith.mulf %345, %348 : vector<2x32xf32>
    %351 = arith.addf %349, %350 : vector<2x32xf32>
    %352 = math.tanh %351 : vector<2x32xf32>
    %353 = arith.mulf %347, %352 : vector<2x32xf32>
    %c14 = arith.constant 14 : index
    %c0_62 = arith.constant 0 : index
    %354 = vector.load %arg8[%c14, %c0_62] : memref<16x32xf32, #tpu.memory_space<vmem>>, vector<2x32xf32>
    tpu.vector_store %arg8[%c14, %c0_62], %353 {strides = array<i32>} : memref<16x32xf32, #tpu.memory_space<vmem>>, vector<2x32xf32>,
    %c0_63 = arith.constant 0 : index
    %c0_64 = arith.constant 0 : index
    %355 = vector.load %arg8[%c0_63, %c0_64] : memref<16x32xf32, #tpu.memory_space<vmem>>, vector<16x32xf32>
    %356 = arith.truncf %355 : vector<16x32xf32> to vector<16x32xbf16>
    %cst_65 = arith.constant dense<0.000000e+00> : vector<16x128xf32>
    %357 = tpu.matmul %356, %9, %cst_65 {dimension_numbers = #tpu.dot_dimension_numbers<[1], [0], [0], [1], [0, 0, 1, 1], [], []>} : vector<16x32xbf16>, vector<32x128xbf16>, vector<16x128xf32> -> vector<16x128xf32>
    %358 = arith.addf %357, %19 : vector<16x128xf32>
    %c0_66 = arith.constant 0 : index
    %c0_67 = arith.constant 0 : index
    %359 = vector.load %arg5[%c0_66, %c0_67] : memref<16x128xf32, #tpu.memory_space<vmem>>, vector<16x128xf32>
    tpu.vector_store %arg5[%c0_66, %c0_67], %358 {strides = array<i32>} : memref<16x128xf32, #tpu.memory_space<vmem>>, vector<16x128xf32>,
    %c0_68 = arith.constant 0 : index
    %c0_69 = arith.constant 0 : index
    %c0_70 = arith.constant 0 : index
    %360 = vector.load %arg6[%c0_68, %c0_69, %c0_70] : memref<2x2x32xf32, #tpu.memory_space<vmem>>, vector<1x2x32xf32>
    %361 = vector.shape_cast %360 : vector<1x2x32xf32> to vector<2x32xf32>
    %362 = vector.shape_cast %334 : vector<2x32xf32> to vector<1x2x32xf32>
    tpu.vector_store %arg6[%c0_68, %c0_69, %c0_70], %362 {strides = array<i32>} : memref<2x2x32xf32, #tpu.memory_space<vmem>>, vector<1x2x32xf32>,
    %c0_71 = arith.constant 0 : index
    %c0_72 = arith.constant 0 : index
    %c0_73 = arith.constant 0 : index
    %363 = vector.load %arg7[%c0_71, %c0_72, %c0_73] : memref<2x2x32xf32, #tpu.memory_space<vmem>>, vector<1x2x32xf32>
    %364 = vector.shape_cast %363 : vector<1x2x32xf32> to vector<2x32xf32>
    %365 = vector.shape_cast %332 : vector<2x32xf32> to vector<1x2x32xf32>
    tpu.vector_store %arg7[%c0_71, %c0_72, %c0_73], %365 {strides = array<i32>} : memref<2x2x32xf32, #tpu.memory_space<vmem>>, vector<1x2x32xf32>,
    %c1_74 = arith.constant 1 : index
    %c0_75 = arith.constant 0 : index
    %c0_76 = arith.constant 0 : index
    %366 = vector.load %arg6[%c1_74, %c0_75, %c0_76] : memref<2x2x32xf32, #tpu.memory_space<vmem>>, vector<1x2x32xf32>
    %367 = vector.shape_cast %366 : vector<1x2x32xf32> to vector<2x32xf32>
    %368 = vector.shape_cast %353 : vector<2x32xf32> to vector<1x2x32xf32>
    tpu.vector_store %arg6[%c1_74, %c0_75, %c0_76], %368 {strides = array<i32>} : memref<2x2x32xf32, #tpu.memory_space<vmem>>, vector<1x2x32xf32>,
    %c1_77 = arith.constant 1 : index
    %c0_78 = arith.constant 0 : index
    %c0_79 = arith.constant 0 : index
    %369 = vector.load %arg7[%c1_77, %c0_78, %c0_79] : memref<2x2x32xf32, #tpu.memory_space<vmem>>, vector<1x2x32xf32>
    %370 = vector.shape_cast %369 : vector<1x2x32xf32> to vector<2x32xf32>
    %371 = vector.shape_cast %351 : vector<2x32xf32> to vector<1x2x32xf32>
    tpu.vector_store %arg7[%c1_77, %c0_78, %c0_79], %371 {strides = array<i32>} : memref<2x2x32xf32, #tpu.memory_space<vmem>>, vector<1x2x32xf32>,
    return
  }
}

</mosaic_0001>

<llo_original>
// kernel: decoder_forward.1
$region0: #{decoder_forward.1}
  #allocation0 [shape = 'u32[]', space=smem, size = 0x4, offset = 0x4, fixed_abs, tag = 'smem constant byte address 0x4 - core index']
  #allocation1 [shape = 'u32[144,128]{1,0:T(1,128)}', space=vmem, size = 0x12000, scoped, tag = 'internal scratch']
  #allocation2 [shape = 'f32[16,32]{1,0:T(8,128)}', space=vmem, size = 0x2000, scoped, tag = 'scratch operand']
  %s0 = inlined_call_operand.vmem [shape: f32[16,16], index: 0, kind: input, shape index: {}]
  %s1 = inlined_call_operand.vmem [shape: f32[2,8], index: 1, kind: input, shape index: {}]
  %s2 = inlined_call_operand.vmem [shape: f32[2,2,32], index: 2, kind: input, shape index: {}]
  %s3 = inlined_call_operand.vmem [shape: f32[2,2,32], index: 3, kind: input, shape index: {}]
  %s4 = inlined_call_operand.vmem [shape: f32[155,128], index: 4, kind: input, shape index: {}]
  %s5 = inlined_call_operand.vmem [shape: f32[16,128], index: 5, kind: output, shape index: {0}]
  %s6 = inlined_call_operand.hbm [shape: f32[2,2,32], index: 6, kind: output, shape index: {1}]
  %s7 = inlined_call_operand.hbm [shape: f32[2,2,32], index: 7, kind: output, shape index: {2}]
  %8 = xla_tuple %s5, %s6, %s7
  %s9 = sld [smem:[#allocation0]]
  $region46: #{decoder_forward.1} parent=0
    _
  %s11 = ssub.s32 1, %s9
  %s12 = scalar_select 0, %s11, %s9
  $region1: #{decoder_forward.1} parent=0
    #allocation3 [shape = 'u8[2048]{0}', space=vmem, size = 0x800, scoped, tag = 'output window, operand 1, single buffered']
    #allocation4 [shape = 's32[1]{0}', space=sflag, size = 0x4, scoped, tag = 'scoped memory for decoder_forward.1']
    #allocation5 [shape = 'u8[2048]{0}', space=vmem, size = 0x800, scoped, tag = 'output window, operand 2, single buffered']
    #allocation6 [shape = 's32[1]{0}', space=sflag, size = 0x4, scoped, tag = 'scoped memory for decoder_forward.1']
    %13 = vsyncpa [#allocation4], 0
    %14 = vsyncpa [#allocation6], 0
    // Predicated region
    $region2: #{decoder_forward.1} parent=1 // pred_check
      _
    $region3: #{decoder_forward.1} parent=1 // pred_check_branch
      %16 = sbr.rel (0) target = $region5
    $region4: #{decoder_forward.1} parent=1 // pred_region
      _
    $region5: #{decoder_forward.1} parent=1 // pred_fallthru
      _
    // Predicated region
    $region6: #{decoder_forward.1} parent=1 // pred_check
      _
    $region7: #{decoder_forward.1} parent=1 // pred_check_branch
      %18 = sbr.rel (0) target = $region9
    $region8: #{decoder_forward.1} parent=1 // pred_region
      _
    $region9: #{decoder_forward.1} parent=1 // pred_fallthru
      _
    // Predicated region
    $region10: #{decoder_forward.1} parent=1 // pred_check
      _
    $region11: #{decoder_forward.1} parent=1 // pred_check_branch
      %20 = sbr.rel (0) target = $region13
    $region12: #{decoder_forward.1} parent=1 // pred_region
      _
    $region13: #{decoder_forward.1} parent=1 // pred_fallthru
      _
    // Predicated region
    $region14: #{decoder_forward.1} parent=1 // pred_check
      _
    $region15: #{decoder_forward.1} parent=1 // pred_check_branch
      %22 = sbr.rel (0) target = $region17
    $region16: #{decoder_forward.1} parent=1 // pred_region
      _
    $region17: #{decoder_forward.1} parent=1 // pred_fallthru
      _
    // Predicated region
    $region18: #{decoder_forward.1} parent=1 // pred_check
      _
    $region19: #{decoder_forward.1} parent=1 // pred_check_branch
      %24 = sbr.rel (0) target = $region21
    $region20: #{decoder_forward.1} parent=1 // pred_region
      _
    $region21: #{decoder_forward.1} parent=1 // pred_fallthru
      _
    %v26 = vld [vmem:[%s4] sm:$0xff]
    %v27 = vld [vmem:[%s4 + $0x8] sm:$0xff]
    %v28 = vpack.c.bf16 %v27, %v26
    %v29 = vld [vmem:[%s4 + $0x10] sm:$0xff]
    %v30 = vpack.c.bf16 %v29, %v29
    %v31 = vld [vmem:[%s4 + $0x18] sm:$0xff]
    %v32 = vld [vmem:[%s4 + $0x20] sm:$0xff]
    %v33 = vld [vmem:[%s4 + $0x28] sm:$0xff]
    %v34 = vld [vmem:[%s4 + $0x30] sm:$0xff]
    %v35 = vpack.c.bf16 %v32, %v31
    %v36 = vpack.c.bf16 %v34, %v33
    %v37 = vld [vmem:[%s4 + $0x38] sm:$0xff]
    %v38 = vld [vmem:[%s4 + $0x40] sm:$0xff]
    %v39 = vld [vmem:[%s4 + $0x48] sm:$0xff]
    %v40 = vld [vmem:[%s4 + $0x50] sm:$0xff]
    %v41 = vld [vmem:[%s4 + $0x58] sm:$0xff]
    %v42 = vld [vmem:[%s4 + $0x60] sm:$0xff]
    %v43 = vld [vmem:[%s4 + $0x68] sm:$0xff]
    %v44 = vld [vmem:[%s4 + $0x70] sm:$0xff]
    %v45 = vpack.c.bf16 %v38, %v37
    %v46 = vpack.c.bf16 %v40, %v39
    %v47 = vpack.c.bf16 %v42, %v41
    %v48 = vpack.c.bf16 %v44, %v43
    %v49 = vld [vmem:[%s4 + $0x78] sm:$0xff]
    %v50 = vld [vmem:[%s4 + $0x80] sm:$0xff]
    %v51 = vld [vmem:[%s4 + $0x88] sm:$0xff]
    %v52 = vld [vmem:[%s4 + $0x90] sm:$0xff]
    %v53 = vpack.c.bf16 %v50, %v49
    %v54 = vpack.c.bf16 %v52, %v51
    %v55 = vld [vmem:[%s4 + $0x98] sm:$0x7]
    %v56 = vlaneseq
    %v57 = vshrl.u32 %v56, 7
    %v58 = vsub.s32 0, %v57
    %v59 = vrot.slane %v55, %v58
    %v60 = vlaneseq
    %v61 = vshrl.u32 %v60, 7
    %v62 = vsub.s32 1, %v61
    %v63 = vrot.slane %v55, %v62
    %v64 = vlaneseq
    %v65 = vshrl.u32 %v64, 7
    %v66 = vsub.s32 2, %v65
    %v67 = vrot.slane %v55, %v66
    %v68 = vld [vmem:[%s0] sm:$0xff]
    %v69 = vld [vmem:[%s0 + $0x8] sm:$0xff]
    %v70 = vpack.c.bf16 %v69, %v68
    %vm71 = vcmask 130048
    %v73 = vsel %vm71, %v70, 0
    %75 = vmatprep.subr.bf16.mxu0 0
    %76 = vmatpush1.bf16.msra.mxu0 %v28
    %77 = vmatprep.subr.bf16.mxu0 0
    %78 = vmatpush1.bf16.msra.mxu0 0
    %79 = vmatprep.subr.bf16.mxu0 0
    %80 = vmatpush1.bf16.msra.mxu0 0
    %81 = vmatprep.subr.bf16.mxu0 0
    %82 = vmatpush1.bf16.msra.mxu0 0
    %83 = vmatprep.subr.bf16.mxu0 0
    %84 = vmatpush1.bf16.msra.mxu0 0
    %85 = vmatprep.subr.bf16.mxu0 0
    %86 = vmatpush1.bf16.msra.mxu0 0
    %87 = vmatprep.subr.bf16.mxu0 0
    %88 = vmatpush1.bf16.msra.mxu0 0
    %89 = vmatprep.subr.bf16.mxu0 0
    %90 = vmatpush1.bf16.msra.mxu0 0
    %91 = vmatprep.subr.bf16.mxu0 0
    %92 = vmatpush1.bf16.msra.mxu0 0
    %93 = vmatprep.subr.bf16.mxu0 0
    %94 = vmatpush1.bf16.msra.mxu0 0
    %95 = vmatprep.subr.bf16.mxu0 0
    %96 = vmatpush1.bf16.msra.mxu0 0
    %97 = vmatprep.subr.bf16.mxu0 0
    %98 = vmatpush1.bf16.msra.mxu0 0
    %99 = vmatprep.subr.bf16.mxu0 0
    %100 = vmatpush1.bf16.msra.mxu0 0
    %101 = vmatprep.subr.bf16.mxu0 0
    %102 = vmatpush1.bf16.msra.mxu0 0
    %103 = vmatprep.subr.bf16.mxu0 0
    %104 = vmatpush1.bf16.msra.mxu0 0
    %105 = vmatprep.subr.bf16.mxu0 0
    %106 = vmatpush1.bf16.msra.mxu0 0
    %107 = vmatprep.mubr.bf16.mxu0 0
    %108 = vmatmul.mubr.bf16.gmra.mrb[0].mxu0 %v73
    %v109 = vpop.f32.mrb[0].mxu0
    %v110 = vadd.f32 0.0, %v109
    %v111 = vpop.f32.mrb[0].mxu0
    %v112 = vpop.f32.mrb[0].mxu0
    %v113 = vadd.f32 0.0, %v112
    %v114 = vpop.f32.mrb[0].mxu0
    %115 = vdwg.mxu0
    %v116 = vld [vmem:[%s1] sm:$0x3]
    %v117 = vpack.c.bf16 %v116, %v116
    %vm118 = vcmask 64512
    %v120 = vsel %vm118, %v117, 0
    %vm122 = vcmask 1043456
    %v124 = vsel %vm122, %v30, 0
    %126 = vmatprep.subr.bf16.mxu0 0
    %127 = vmatpush1.bf16.msra.mxu0 %v124
    %128 = vmatprep.subr.bf16.mxu0 0
    %129 = vmatpush1.bf16.msra.mxu0 0
    %130 = vmatprep.subr.bf16.mxu0 0
    %131 = vmatpush1.bf16.msra.mxu0 0
    %132 = vmatprep.subr.bf16.mxu0 0
    %133 = vmatpush1.bf16.msra.mxu0 0
    %134 = vmatprep.subr.bf16.mxu0 0
    %135 = vmatpush1.bf16.msra.mxu0 0
    %136 = vmatprep.subr.bf16.mxu0 0
    %137 = vmatpush1.bf16.msra.mxu0 0
    %138 = vmatprep.subr.bf16.mxu0 0
    %139 = vmatpush1.bf16.msra.mxu0 0
    %140 = vmatprep.subr.bf16.mxu0 0
    %141 = vmatpush1.bf16.msra.mxu0 0
    %142 = vmatprep.subr.bf16.mxu0 0
    %143 = vmatpush1.bf16.msra.mxu0 0
    %144 = vmatprep.subr.bf16.mxu0 0
    %145 = vmatpush1.bf16.msra.mxu0 0
    %146 = vmatprep.subr.bf16.mxu0 0
    %147 = vmatpush1.bf16.msra.mxu0 0
    %148 = vmatprep.subr.bf16.mxu0 0
    %149 = vmatpush1.bf16.msra.mxu0 0
    %150 = vmatprep.subr.bf16.mxu0 0
    %151 = vmatpush1.bf16.msra.mxu0 0
    %152 = vmatprep.subr.bf16.mxu0 0
    %153 = vmatpush1.bf16.msra.mxu0 0
    %154 = vmatprep.subr.bf16.mxu0 0
    %155 = vmatpush1.bf16.msra.mxu0 0
    %156 = vmatprep.subr.bf16.mxu0 0
    %157 = vmatpush1.bf16.msra.mxu0 0
    %158 = vmatprep.mubr.bf16.mxu0 0
    %159 = vmatmul.mubr.bf16.gmra.mrb[0].mxu0 %v120
    %v160 = vpop.f32.mrb[0].mxu0
    %v161 = vadd.f32 %v59, %v160
    %v162 = vpop.f32.mrb[0].mxu0
    %v163 = vpop.f32.mrb[0].mxu0
    %v164 = vpop.f32.mrb[0].mxu0
    %165 = vdwg.mxu0
    %v166 = vld [vmem:[%s2] sm:$0x3]
    %s167 = scalar_lea.vmem %s2, 2
    %v168 = vld [vmem:[%s167] sm:$0x3]
    %v169 = vld [vmem:[%s3] sm:$0x3]
    %s170 = scalar_lea.vmem %s3, 2
    %v171 = vld [vmem:[%s170] sm:$0x3]
    %v172 = vadd.f32 %v110, %v161
    %v173 = vpack.c.bf16 %v166, %v166
    %vm174 = vcmask 261120
    %v176 = vsel %vm174, %v173, 0
    %178 = vmatprep.subr.bf16.mxu0 0
    %179 = vmatpush1.bf16.msra.mxu0 %v35
    %180 = vmatprep.subr.bf16.mxu0 0
    %181 = vmatpush1.bf16.msra.mxu0 %v36
    %182 = vmatprep.subr.bf16.mxu0 0
    %183 = vmatpush1.bf16.msra.mxu0 0
    %184 = vmatprep.subr.bf16.mxu0 0
    %185 = vmatpush1.bf16.msra.mxu0 0
    %186 = vmatprep.subr.bf16.mxu0 0
    %187 = vmatpush1.bf16.msra.mxu0 0
    %188 = vmatprep.subr.bf16.mxu0 0
    %189 = vmatpush1.bf16.msra.mxu0 0
    %190 = vmatprep.subr.bf16.mxu0 0
    %191 = vmatpush1.bf16.msra.mxu0 0
    %192 = vmatprep.subr.bf16.mxu0 0
    %193 = vmatpush1.bf16.msra.mxu0 0
    %194 = vmatprep.subr.bf16.mxu0 0
    %195 = vmatpush1.bf16.msra.mxu0 0
    %196 = vmatprep.subr.bf16.mxu0 0
    %197 = vmatpush1.bf16.msra.mxu0 0
    %198 = vmatprep.subr.bf16.mxu0 0
    %199 = vmatpush1.bf16.msra.mxu0 0
    %200 = vmatprep.subr.bf16.mxu0 0
    %201 = vmatpush1.bf16.msra.mxu0 0
    %202 = vmatprep.subr.bf16.mxu0 0
    %203 = vmatpush1.bf16.msra.mxu0 0
    %204 = vmatprep.subr.bf16.mxu0 0
    %205 = vmatpush1.bf16.msra.mxu0 0
    %206 = vmatprep.subr.bf16.mxu0 0
    %207 = vmatpush1.bf16.msra.mxu0 0
    %208 = vmatprep.subr.bf16.mxu0 0
    %209 = vmatpush1.bf16.msra.mxu0 0
    %210 = vmatprep.mubr.bf16.mxu0 0
    %211 = vmatmul.mubr.bf16.gmra.mrb[0].mxu0 %v176
    %v212 = vpop.f32.mrb[0].mxu0
    %v213 = vadd.f32 0.0, %v212
    %v214 = vpop.f32.mrb[0].mxu0
    %v215 = vpop.f32.mrb[0].mxu0
    %v216 = vpop.f32.mrb[0].mxu0
    %217 = vdwg.mxu0
    %v218 = vadd.f32 %v172, %v213
    %v219 = vxor.u32 %v218, 2147483648
    %v220 = vmul.f32 %v219, 1.442695
    %v221 = vpow.pop %v220
    %v222 = vadd.f32 %v221, 1.0
    %v223 = vrcp.pop %v222
    %v224 = vmul.f32 1.0, %v223
    %v225 = vtanh.pop %v218
    %227 = vrot.lane.b32.xlu0 %v169, 32
    %v228 = vpop.permute.xlu0 %227
    %v230 = vmul.f32 %v224, %v228
    %232 = vrot.lane.b32.xlu0 %v225, 64
    %v233 = vpop.permute.xlu0 %232
    %v235 = vmul.f32 %v224, %v233
    %237 = vrot.lane.b32.xlu0 %v235, 32
    %v238 = vpop.permute.xlu0 %237
    %v240 = vadd.f32 %v230, %v238
    %v241 = vtanh.pop %v240
    %243 = vrot.lane.b32.xlu0 %v241, 64
    %v244 = vpop.permute.xlu0 %243
    %v246 = vmul.f32 %v224, %v244
    %248 = vrot.lane.b32.xlu0 %v246, 32
    %v249 = vpop.permute.xlu0 %248
    %252 = vrot.lane.b32.xlu0 %v168, 32
    %v253 = vpop.permute.xlu0 %252
    %v255 = vsel %vm174, %v249, %v253
    %v256 = vpack.c.bf16 %v255, %v255
    %vm257 = vcmask 523264
    %v259 = vsel %vm257, %v256, 0
    %261 = vmatprep.subr.bf16.mxu0 0
    %262 = vmatpush1.bf16.msra.mxu0 %v45
    %263 = vmatprep.subr.bf16.mxu0 0
    %264 = vmatpush1.bf16.msra.mxu0 %v46
    %265 = vmatprep.subr.bf16.mxu0 0
    %266 = vmatpush1.bf16.msra.mxu0 %v47
    %267 = vmatprep.subr.bf16.mxu0 0
    %268 = vmatpush1.bf16.msra.mxu0 %v48
    %269 = vmatprep.subr.bf16.mxu0 0
    %270 = vmatpush1.bf16.msra.mxu0 0
    %271 = vmatprep.subr.bf16.mxu0 0
    %272 = vmatpush1.bf16.msra.mxu0 0
    %273 = vmatprep.subr.bf16.mxu0 0
    %274 = vmatpush1.bf16.msra.mxu0 0
    %275 = vmatprep.subr.bf16.mxu0 0
    %276 = vmatpush1.bf16.msra.mxu0 0
    %277 = vmatprep.subr.bf16.mxu0 0
    %278 = vmatpush1.bf16.msra.mxu0 0
    %279 = vmatprep.subr.bf16.mxu0 0
    %280 = vmatpush1.bf16.msra.mxu0 0
    %281 = vmatprep.subr.bf16.mxu0 0
    %282 = vmatpush1.bf16.msra.mxu0 0
    %283 = vmatprep.subr.bf16.mxu0 0
    %284 = vmatpush1.bf16.msra.mxu0 0
    %285 = vmatprep.subr.bf16.mxu0 0
    %286 = vmatpush1.bf16.msra.mxu0 0
    %287 = vmatprep.subr.bf16.mxu0 0
    %288 = vmatpush1.bf16.msra.mxu0 0
    %289 = vmatprep.subr.bf16.mxu0 0
    %290 = vmatpush1.bf16.msra.mxu0 0
    %291 = vmatprep.subr.bf16.mxu0 0
    %292 = vmatpush1.bf16.msra.mxu0 0
    %293 = vmatprep.mubr.bf16.mxu0 0
    %294 = vmatmul.mubr.bf16.gmra.mrb[0].mxu0 %v259
    %v295 = vpop.f32.mrb[0].mxu0
    %v296 = vadd.f32 %v63, %v295
    %v297 = vpop.f32.mrb[0].mxu0
    %v298 = vpop.f32.mrb[0].mxu0
    %v299 = vpop.f32.mrb[0].mxu0
    %300 = vdwg.mxu0
    %v301 = vxor.u32 %v296, 2147483648
    %v302 = vmul.f32 %v301, 1.442695
    %v303 = vpow.pop %v302
    %v304 = vadd.f32 %v303, 1.0
    %v305 = vrcp.pop %v304
    %v306 = vmul.f32 1.0, %v305
    %v307 = vtanh.pop %v296
    %309 = vrot.lane.b32.xlu0 %v171, 32
    %v310 = vpop.permute.xlu0 %309
    %v312 = vmul.f32 %v306, %v310
    %314 = vrot.lane.b32.xlu0 %v307, 64
    %v315 = vpop.permute.xlu0 %314
    %v317 = vmul.f32 %v306, %v315
    %319 = vrot.lane.b32.xlu0 %v317, 32
    %v320 = vpop.permute.xlu0 %319
    %v322 = vadd.f32 %v312, %v320
    %v323 = vtanh.pop %v322
    %325 = vrot.lane.b32.xlu0 %v323, 64
    %v326 = vpop.permute.xlu0 %325
    %v328 = vmul.f32 %v306, %v326
    %330 = vrot.lane.b32.xlu0 %v328, 32
    %v331 = vpop.permute.xlu0 %330
    %vm333 = vcmask 254976
    %334 = vst.msk [vmem:[#allocation2] sm:$0x3] %vm333, %v331
    %v336 = vrot.slane %v161, 6
    %v338 = vadd.f32 %v110, %v336
    %v339 = vpack.c.bf16 %v246, %v246
    %341 = vrot.lane.b32.xlu0 %v339, 32
    %v342 = vpop.permute.xlu0 %341
    %v344 = vsel %vm174, %v342, 0
    %346 = vmatprep.subr.bf16.mxu0 0
    %347 = vmatpush1.bf16.msra.mxu0 %v35
    %348 = vmatprep.subr.bf16.mxu0 0
    %349 = vmatpush1.bf16.msra.mxu0 %v36
    %350 = vmatprep.subr.bf16.mxu0 0
    %351 = vmatpush1.bf16.msra.mxu0 0
    %352 = vmatprep.subr.bf16.mxu0 0
    %353 = vmatpush1.bf16.msra.mxu0 0
    %354 = vmatprep.subr.bf16.mxu0 0
    %355 = vmatpush1.bf16.msra.mxu0 0
    %356 = vmatprep.subr.bf16.mxu0 0
    %357 = vmatpush1.bf16.msra.mxu0 0
    %358 = vmatprep.subr.bf16.mxu0 0
    %359 = vmatpush1.bf16.msra.mxu0 0
    %360 = vmatprep.subr.bf16.mxu0 0
    %361 = vmatpush1.bf16.msra.mxu0 0
    %362 = vmatprep.subr.bf16.mxu0 0
    %363 = vmatpush1.bf16.msra.mxu0 0
    %364 = vmatprep.subr.bf16.mxu0 0
    %365 = vmatpush1.bf16.msra.mxu0 0
    %366 = vmatprep.subr.bf16.mxu0 0
    %367 = vmatpush1.bf16.msra.mxu0 0
    %368 = vmatprep.subr.bf16.mxu0 0
    %369 = vmatpush1.bf16.msra.mxu0 0
    %370 = vmatprep.subr.bf16.mxu0 0
    %371 = vmatpush1.bf16.msra.mxu0 0
    %372 = vmatprep.subr.bf16.mxu0 0
    %373 = vmatpush1.bf16.msra.mxu0 0
    %374 = vmatprep.subr.bf16.mxu0 0
    %375 = vmatpush1.bf16.msra.mxu0 0
    %376 = vmatprep.subr.bf16.mxu0 0
    %377 = vmatpush1.bf16.msra.mxu0 0
    %378 = vmatprep.mubr.bf16.mxu0 0
    %379 = vmatmul.mubr.bf16.gmra.mrb[0].mxu0 %v344
    %v380 = vpop.f32.mrb[0].mxu0
    %v381 = vadd.f32 0.0, %v380
    %v382 = vpop.f32.mrb[0].mxu0
    %v383 = vpop.f32.mrb[0].mxu0
    %v384 = vpop.f32.mrb[0].mxu0
    %385 = vdwg.mxu0
    %v387 = vrot.slane %v381, 6
    %v389 = vadd.f32 %v338, %v387
    %v390 = vxor.u32 %v389, 2147483648
    %v391 = vmul.f32 %v390, 1.442695
    %v392 = vpow.pop %v391
    %v393 = vadd.f32 %v392, 1.0
    %v394 = vrcp.pop %v393
    %v395 = vmul.f32 1.0, %v394
    %v396 = vtanh.pop %v389
    %v398 = vrot.slane %v240, 6
    %v400 = vmul.f32 %v395, %v398
    %402 = vrot.lane.b32.xlu0 %v396, 64
    %v403 = vpop.permute.xlu0 %402
    %v405 = vmul.f32 %v395, %v403
    %407 = vrot.lane.b32.xlu0 %v405, 32
    %v408 = vpop.permute.xlu0 %407
    %v410 = vadd.f32 %v400, %v408
    %v411 = vtanh.pop %v410
    %413 = vrot.lane.b32.xlu0 %v411, 64
    %v414 = vpop.permute.xlu0 %413
    %v416 = vmul.f32 %v395, %v414
    %418 = vrot.lane.b32.xlu0 %v416, 32
    %v419 = vpop.permute.xlu0 %418
    %v421 = vrot.slane %v328, 6
    %422 = vrot.lane.b32.xlu0 %v421, 64
    %v423 = vpop.permute.xlu0 %422
    %v425 = vsel %vm174, %v419, %v423
    %v426 = vpack.c.bf16 %v425, %v425
    %v428 = vrot.slane %v426, 1
    %v430 = vsel %vm257, %v428, 0
    %432 = vmatprep.subr.bf16.mxu0 0
    %433 = vmatpush1.bf16.msra.mxu0 %v45
    %434 = vmatprep.subr.bf16.mxu0 0
    %435 = vmatpush1.bf16.msra.mxu0 %v46
    %436 = vmatprep.subr.bf16.mxu0 0
    %437 = vmatpush1.bf16.msra.mxu0 %v47
    %438 = vmatprep.subr.bf16.mxu0 0
    %439 = vmatpush1.bf16.msra.mxu0 %v48
    %440 = vmatprep.subr.bf16.mxu0 0
    %441 = vmatpush1.bf16.msra.mxu0 0
    %442 = vmatprep.subr.bf16.mxu0 0
    %443 = vmatpush1.bf16.msra.mxu0 0
    %444 = vmatprep.subr.bf16.mxu0 0
    %445 = vmatpush1.bf16.msra.mxu0 0
    %446 = vmatprep.subr.bf16.mxu0 0
    %447 = vmatpush1.bf16.msra.mxu0 0
    %448 = vmatprep.subr.bf16.mxu0 0
    %449 = vmatpush1.bf16.msra.mxu0 0
    %450 = vmatprep.subr.bf16.mxu0 0
    %451 = vmatpush1.bf16.msra.mxu0 0
    %452 = vmatprep.subr.bf16.mxu0 0
    %453 = vmatpush1.bf16.msra.mxu0 0
    %454 = vmatprep.subr.bf16.mxu0 0
    %455 = vmatpush1.bf16.msra.mxu0 0
    %456 = vmatprep.subr.bf16.mxu0 0
    %457 = vmatpush1.bf16.msra.mxu0 0
    %458 = vmatprep.subr.bf16.mxu0 0
    %459 = vmatpush1.bf16.msra.mxu0 0
    %460 = vmatprep.subr.bf16.mxu0 0
    %461 = vmatpush1.bf16.msra.mxu0 0
    %462 = vmatprep.subr.bf16.mxu0 0
    %463 = vmatpush1.bf16.msra.mxu0 0
    %464 = vmatprep.mubr.bf16.mxu0 0
    %465 = vmatmul.mubr.bf16.gmra.mrb[0].mxu0 %v430
    %v466 = vpop.f32.mrb[0].mxu0
    %v467 = vadd.f32 %v63, %v466
    %v468 = vpop.f32.mrb[0].mxu0
    %v469 = vpop.f32.mrb[0].mxu0
    %v470 = vpop.f32.mrb[0].mxu0
    %471 = vdwg.mxu0
    %v472 = vxor.u32 %v467, 2147483648
    %v473 = vmul.f32 %v472, 1.442695
    %v474 = vpow.pop %v473
    %v475 = vadd.f32 %v474, 1.0
    %v476 = vrcp.pop %v475
    %v477 = vmul.f32 1.0, %v476
    %v478 = vtanh.pop %v467
    %v479 = vmul.f32 %v477, %v322
    %481 = vrot.lane.b32.xlu0 %v478, 64
    %v482 = vpop.permute.xlu0 %481
    %v484 = vmul.f32 %v477, %v482
    %486 = vrot.lane.b32.xlu0 %v484, 32
    %v487 = vpop.permute.xlu0 %486
    %v489 = vadd.f32 %v479, %v487
    %v490 = vtanh.pop %v489
    %492 = vrot.lane.b32.xlu0 %v490, 64
    %v493 = vpop.permute.xlu0 %492
    %v495 = vmul.f32 %v477, %v493
    %497 = vrot.lane.b32.xlu0 %v495, 32
    %v498 = vpop.permute.xlu0 %497
    %500 = vst.msk [vmem:[#allocation2 + $0x2] sm:$0x3] %vm333, %v498
    %v501 = vrot.slane %v161, 4
    %v503 = vadd.f32 %v110, %v501
    %v504 = vpack.c.bf16 %v416, %v416
    %v506 = vrot.slane %v504, 1
    %507 = vrot.lane.b32.xlu0 %v506, 32
    %v508 = vpop.permute.xlu0 %507
    %v510 = vsel %vm174, %v508, 0
    %512 = vmatprep.subr.bf16.mxu0 0
    %513 = vmatpush1.bf16.msra.mxu0 %v35
    %514 = vmatprep.subr.bf16.mxu0 0
    %515 = vmatpush1.bf16.msra.mxu0 %v36
    %516 = vmatprep.subr.bf16.mxu0 0
    %517 = vmatpush1.bf16.msra.mxu0 0
    %518 = vmatprep.subr.bf16.mxu0 0
    %519 = vmatpush1.bf16.msra.mxu0 0
    %520 = vmatprep.subr.bf16.mxu0 0
    %521 = vmatpush1.bf16.msra.mxu0 0
    %522 = vmatprep.subr.bf16.mxu0 0
    %523 = vmatpush1.bf16.msra.mxu0 0
    %524 = vmatprep.subr.bf16.mxu0 0
    %525 = vmatpush1.bf16.msra.mxu0 0
    %526 = vmatprep.subr.bf16.mxu0 0
    %527 = vmatpush1.bf16.msra.mxu0 0
    %528 = vmatprep.subr.bf16.mxu0 0
    %529 = vmatpush1.bf16.msra.mxu0 0
    %530 = vmatprep.subr.bf16.mxu0 0
    %531 = vmatpush1.bf16.msra.mxu0 0
    %532 = vmatprep.subr.bf16.mxu0 0
    %533 = vmatpush1.bf16.msra.mxu0 0
    %534 = vmatprep.subr.bf16.mxu0 0
    %535 = vmatpush1.bf16.msra.mxu0 0
    %536 = vmatprep.subr.bf16.mxu0 0
    %537 = vmatpush1.bf16.msra.mxu0 0
    %538 = vmatprep.subr.bf16.mxu0 0
    %539 = vmatpush1.bf16.msra.mxu0 0
    %540 = vmatprep.subr.bf16.mxu0 0
    %541 = vmatpush1.bf16.msra.mxu0 0
    %542 = vmatprep.subr.bf16.mxu0 0
    %543 = vmatpush1.bf16.msra.mxu0 0
    %544 = vmatprep.mubr.bf16.mxu0 0
    %545 = vmatmul.mubr.bf16.gmra.mrb[0].mxu0 %v510
    %v546 = vpop.f32.mrb[0].mxu0
    %v547 = vadd.f32 0.0, %v546
    %v548 = vpop.f32.mrb[0].mxu0
    %v549 = vpop.f32.mrb[0].mxu0
    %v550 = vpop.f32.mrb[0].mxu0
    %551 = vdwg.mxu0
    %v553 = vrot.slane %v547, 4
    %v555 = vadd.f32 %v503, %v553
    %v556 = vxor.u32 %v555, 2147483648
    %v557 = vmul.f32 %v556, 1.442695
    %v558 = vpow.pop %v557
    %v559 = vadd.f32 %v558, 1.0
    %v560 = vrcp.pop %v559
    %v561 = vmul.f32 1.0, %v560
    %v562 = vtanh.pop %v555
    %v564 = vrot.slane %v410, 6
    %v566 = vmul.f32 %v561, %v564
    %568 = vrot.lane.b32.xlu0 %v562, 64
    %v569 = vpop.permute.xlu0 %568
    %v571 = vmul.f32 %v561, %v569
    %573 = vrot.lane.b32.xlu0 %v571, 32
    %v574 = vpop.permute.xlu0 %573
    %v576 = vadd.f32 %v566, %v574
    %v577 = vtanh.pop %v576
    %579 = vrot.lane.b32.xlu0 %v577, 64
    %v580 = vpop.permute.xlu0 %579
    %v582 = vmul.f32 %v561, %v580
    %584 = vrot.lane.b32.xlu0 %v582, 32
    %v585 = vpop.permute.xlu0 %584
    %v587 = vrot.slane %v495, 4
    %588 = vrot.lane.b32.xlu0 %v587, 64
    %v589 = vpop.permute.xlu0 %588
    %v591 = vsel %vm174, %v585, %v589
    %v592 = vpack.c.bf16 %v591, %v591
    %v594 = vrot.slane %v592, 2
    %v596 = vsel %vm257, %v594, 0
    %598 = vmatprep.subr.bf16.mxu0 0
    %599 = vmatpush1.bf16.msra.mxu0 %v45
    %600 = vmatprep.subr.bf16.mxu0 0
    %601 = vmatpush1.bf16.msra.mxu0 %v46
    %602 = vmatprep.subr.bf16.mxu0 0
    %603 = vmatpush1.bf16.msra.mxu0 %v47
    %604 = vmatprep.subr.bf16.mxu0 0
    %605 = vmatpush1.bf16.msra.mxu0 %v48
    %606 = vmatprep.subr.bf16.mxu0 0
    %607 = vmatpush1.bf16.msra.mxu0 0
    %608 = vmatprep.subr.bf16.mxu0 0
    %609 = vmatpush1.bf16.msra.mxu0 0
    %610 = vmatprep.subr.bf16.mxu0 0
    %611 = vmatpush1.bf16.msra.mxu0 0
    %612 = vmatprep.subr.bf16.mxu0 0
    %613 = vmatpush1.bf16.msra.mxu0 0
    %614 = vmatprep.subr.bf16.mxu0 0
    %615 = vmatpush1.bf16.msra.mxu0 0
    %616 = vmatprep.subr.bf16.mxu0 0
    %617 = vmatpush1.bf16.msra.mxu0 0
    %618 = vmatprep.subr.bf16.mxu0 0
    %619 = vmatpush1.bf16.msra.mxu0 0
    %620 = vmatprep.subr.bf16.mxu0 0
    %621 = vmatpush1.bf16.msra.mxu0 0
    %622 = vmatprep.subr.bf16.mxu0 0
    %623 = vmatpush1.bf16.msra.mxu0 0
    %624 = vmatprep.subr.bf16.mxu0 0
    %625 = vmatpush1.bf16.msra.mxu0 0
    %626 = vmatprep.subr.bf16.mxu0 0
    %627 = vmatpush1.bf16.msra.mxu0 0
    %628 = vmatprep.subr.bf16.mxu0 0
    %629 = vmatpush1.bf16.msra.mxu0 0
    %630 = vmatprep.mubr.bf16.mxu0 0
    %631 = vmatmul.mubr.bf16.gmra.mrb[0].mxu0 %v596
    %v632 = vpop.f32.mrb[0].mxu0
    %v633 = vadd.f32 %v63, %v632
    %v634 = vpop.f32.mrb[0].mxu0
    %v635 = vpop.f32.mrb[0].mxu0
    %v636 = vpop.f32.mrb[0].mxu0
    %637 = vdwg.mxu0
    %v638 = vxor.u32 %v633, 2147483648
    %v639 = vmul.f32 %v638, 1.442695
    %v640 = vpow.pop %v639
    %v641 = vadd.f32 %v640, 1.0
    %v642 = vrcp.pop %v641
    %v643 = vmul.f32 1.0, %v642
    %v644 = vtanh.pop %v633
    %v645 = vmul.f32 %v643, %v489
    %647 = vrot.lane.b32.xlu0 %v644, 64
    %v648 = vpop.permute.xlu0 %647
    %v650 = vmul.f32 %v643, %v648
    %652 = vrot.lane.b32.xlu0 %v650, 32
    %v653 = vpop.permute.xlu0 %652
    %v655 = vadd.f32 %v645, %v653
    %v656 = vtanh.pop %v655
    %658 = vrot.lane.b32.xlu0 %v656, 64
    %v659 = vpop.permute.xlu0 %658
    %v661 = vmul.f32 %v643, %v659
    %663 = vrot.lane.b32.xlu0 %v661, 32
    %v664 = vpop.permute.xlu0 %663
    %666 = vst.msk [vmem:[#allocation2 + $0x4] sm:$0x3] %vm333, %v664
    %v667 = vrot.slane %v161, 2
    %v669 = vadd.f32 %v110, %v667
    %v670 = vpack.c.bf16 %v582, %v582
    %v672 = vrot.slane %v670, 2
    %673 = vrot.lane.b32.xlu0 %v672, 32
    %v674 = vpop.permute.xlu0 %673
    %v676 = vsel %vm174, %v674, 0
    %678 = vmatprep.subr.bf16.mxu0 0
    %679 = vmatpush1.bf16.msra.mxu0 %v35
    %680 = vmatprep.subr.bf16.mxu0 0
    %681 = vmatpush1.bf16.msra.mxu0 %v36
    %682 = vmatprep.subr.bf16.mxu0 0
    %683 = vmatpush1.bf16.msra.mxu0 0
    %684 = vmatprep.subr.bf16.mxu0 0
    %685 = vmatpush1.bf16.msra.mxu0 0
    %686 = vmatprep.subr.bf16.mxu0 0
    %687 = vmatpush1.bf16.msra.mxu0 0
    %688 = vmatprep.subr.bf16.mxu0 0
    %689 = vmatpush1.bf16.msra.mxu0 0
    %690 = vmatprep.subr.bf16.mxu0 0
    %691 = vmatpush1.bf16.msra.mxu0 0
    %692 = vmatprep.subr.bf16.mxu0 0
    %693 = vmatpush1.bf16.msra.mxu0 0
    %694 = vmatprep.subr.bf16.mxu0 0
    %695 = vmatpush1.bf16.msra.mxu0 0
    %696 = vmatprep.subr.bf16.mxu0 0
    %697 = vmatpush1.bf16.msra.mxu0 0
    %698 = vmatprep.subr.bf16.mxu0 0
    %699 = vmatpush1.bf16.msra.mxu0 0
    %700 = vmatprep.subr.bf16.mxu0 0
    %701 = vmatpush1.bf16.msra.mxu0 0
    %702 = vmatprep.subr.bf16.mxu0 0
    %703 = vmatpush1.bf16.msra.mxu0 0
    %704 = vmatprep.subr.bf16.mxu0 0
    %705 = vmatpush1.bf16.msra.mxu0 0
    %706 = vmatprep.subr.bf16.mxu0 0
    %707 = vmatpush1.bf16.msra.mxu0 0
    %708 = vmatprep.subr.bf16.mxu0 0
    %709 = vmatpush1.bf16.msra.mxu0 0
    %710 = vmatprep.mubr.bf16.mxu0 0
    %711 = vmatmul.mubr.bf16.gmra.mrb[0].mxu0 %v676
    %v712 = vpop.f32.mrb[0].mxu0
    %v713 = vadd.f32 0.0, %v712
    %v714 = vpop.f32.mrb[0].mxu0
    %v715 = vpop.f32.mrb[0].mxu0
    %v716 = vpop.f32.mrb[0].mxu0
    %717 = vdwg.mxu0
    %v719 = vrot.slane %v713, 2
    %v721 = vadd.f32 %v669, %v719
    %v722 = vxor.u32 %v721, 2147483648
    %v723 = vmul.f32 %v722, 1.442695
    %v724 = vpow.pop %v723
    %v725 = vadd.f32 %v724, 1.0
    %v726 = vrcp.pop %v725
    %v727 = vmul.f32 1.0, %v726
    %v728 = vtanh.pop %v721
    %v730 = vrot.slane %v576, 6
    %v732 = vmul.f32 %v727, %v730
    %734 = vrot.lane.b32.xlu0 %v728, 64
    %v735 = vpop.permute.xlu0 %734
    %v737 = vmul.f32 %v727, %v735
    %739 = vrot.lane.b32.xlu0 %v737, 32
    %v740 = vpop.permute.xlu0 %739
    %v742 = vadd.f32 %v732, %v740
    %v743 = vtanh.pop %v742
    %745 = vrot.lane.b32.xlu0 %v743, 64
    %v746 = vpop.permute.xlu0 %745
    %v748 = vmul.f32 %v727, %v746
    %750 = vrot.lane.b32.xlu0 %v748, 32
    %v751 = vpop.permute.xlu0 %750
    %v753 = vrot.slane %v661, 2
    %754 = vrot.lane.b32.xlu0 %v753, 64
    %v755 = vpop.permute.xlu0 %754
    %v757 = vsel %vm174, %v751, %v755
    %v758 = vpack.c.bf16 %v757, %v757
    %v760 = vrot.slane %v758, 3
    %v762 = vsel %vm257, %v760, 0
    %764 = vmatprep.subr.bf16.mxu0 0
    %765 = vmatpush1.bf16.msra.mxu0 %v45
    %766 = vmatprep.subr.bf16.mxu0 0
    %767 = vmatpush1.bf16.msra.mxu0 %v46
    %768 = vmatprep.subr.bf16.mxu0 0
    %769 = vmatpush1.bf16.msra.mxu0 %v47
    %770 = vmatprep.subr.bf16.mxu0 0
    %771 = vmatpush1.bf16.msra.mxu0 %v48
    %772 = vmatprep.subr.bf16.mxu0 0
    %773 = vmatpush1.bf16.msra.mxu0 0
    %774 = vmatprep.subr.bf16.mxu0 0
    %775 = vmatpush1.bf16.msra.mxu0 0
    %776 = vmatprep.subr.bf16.mxu0 0
    %777 = vmatpush1.bf16.msra.mxu0 0
    %778 = vmatprep.subr.bf16.mxu0 0
    %779 = vmatpush1.bf16.msra.mxu0 0
    %780 = vmatprep.subr.bf16.mxu0 0
    %781 = vmatpush1.bf16.msra.mxu0 0
    %782 = vmatprep.subr.bf16.mxu0 0
    %783 = vmatpush1.bf16.msra.mxu0 0
    %784 = vmatprep.subr.bf16.mxu0 0
    %785 = vmatpush1.bf16.msra.mxu0 0
    %786 = vmatprep.subr.bf16.mxu0 0
    %787 = vmatpush1.bf16.msra.mxu0 0
    %788 = vmatprep.subr.bf16.mxu0 0
    %789 = vmatpush1.bf16.msra.mxu0 0
    %790 = vmatprep.subr.bf16.mxu0 0
    %791 = vmatpush1.bf16.msra.mxu0 0
    %792 = vmatprep.subr.bf16.mxu0 0
    %793 = vmatpush1.bf16.msra.mxu0 0
    %794 = vmatprep.subr.bf16.mxu0 0
    %795 = vmatpush1.bf16.msra.mxu0 0
    %796 = vmatprep.mubr.bf16.mxu0 0
    %797 = vmatmul.mubr.bf16.gmra.mrb[0].mxu0 %v762
    %v798 = vpop.f32.mrb[0].mxu0
    %v799 = vadd.f32 %v63, %v798
    %v800 = vpop.f32.mrb[0].mxu0
    %v801 = vpop.f32.mrb[0].mxu0
    %v802 = vpop.f32.mrb[0].mxu0
    %803 = vdwg.mxu0
    %v804 = vxor.u32 %v799, 2147483648
    %v805 = vmul.f32 %v804, 1.442695
    %v806 = vpow.pop %v805
    %v807 = vadd.f32 %v806, 1.0
    %v808 = vrcp.pop %v807
    %v809 = vmul.f32 1.0, %v808
    %v810 = vtanh.pop %v799
    %v811 = vmul.f32 %v809, %v655
    %813 = vrot.lane.b32.xlu0 %v810, 64
    %v814 = vpop.permute.xlu0 %813
    %v816 = vmul.f32 %v809, %v814
    %818 = vrot.lane.b32.xlu0 %v816, 32
    %v819 = vpop.permute.xlu0 %818
    %v821 = vadd.f32 %v811, %v819
    %v822 = vtanh.pop %v821
    %824 = vrot.lane.b32.xlu0 %v822, 64
    %v825 = vpop.permute.xlu0 %824
    %v827 = vmul.f32 %v809, %v825
    %829 = vrot.lane.b32.xlu0 %v827, 32
    %v830 = vpop.permute.xlu0 %829
    %832 = vst.msk [vmem:[#allocation2 + $0x6] sm:$0x3] %vm333, %v830
    %v833 = vadd.f32 %v113, %v161
    %v834 = vpack.c.bf16 %v748, %v748
    %v836 = vrot.slane %v834, 3
    %837 = vrot.lane.b32.xlu0 %v836, 32
    %v838 = vpop.permute.xlu0 %837
    %v840 = vsel %vm174, %v838, 0
    %842 = vmatprep.subr.bf16.mxu0 0
    %843 = vmatpush1.bf16.msra.mxu0 %v35
    %844 = vmatprep.subr.bf16.mxu0 0
    %845 = vmatpush1.bf16.msra.mxu0 %v36
    %846 = vmatprep.subr.bf16.mxu0 0
    %847 = vmatpush1.bf16.msra.mxu0 0
    %848 = vmatprep.subr.bf16.mxu0 0
    %849 = vmatpush1.bf16.msra.mxu0 0
    %850 = vmatprep.subr.bf16.mxu0 0
    %851 = vmatpush1.bf16.msra.mxu0 0
    %852 = vmatprep.subr.bf16.mxu0 0
    %853 = vmatpush1.bf16.msra.mxu0 0
    %854 = vmatprep.subr.bf16.mxu0 0
    %855 = vmatpush1.bf16.msra.mxu0 0
    %856 = vmatprep.subr.bf16.mxu0 0
    %857 = vmatpush1.bf16.msra.mxu0 0
    %858 = vmatprep.subr.bf16.mxu0 0
    %859 = vmatpush1.bf16.msra.mxu0 0
    %860 = vmatprep.subr.bf16.mxu0 0
    %861 = vmatpush1.bf16.msra.mxu0 0
    %862 = vmatprep.subr.bf16.mxu0 0
    %863 = vmatpush1.bf16.msra.mxu0 0
    %864 = vmatprep.subr.bf16.mxu0 0
    %865 = vmatpush1.bf16.msra.mxu0 0
    %866 = vmatprep.subr.bf16.mxu0 0
    %867 = vmatpush1.bf16.msra.mxu0 0
    %868 = vmatprep.subr.bf16.mxu0 0
    %869 = vmatpush1.bf16.msra.mxu0 0
    %870 = vmatprep.subr.bf16.mxu0 0
    %871 = vmatpush1.bf16.msra.mxu0 0
    %872 = vmatprep.subr.bf16.mxu0 0
    %873 = vmatpush1.bf16.msra.mxu0 0
    %874 = vmatprep.mubr.bf16.mxu0 0
    %875 = vmatmul.mubr.bf16.gmra.mrb[0].mxu0 %v840
    %v876 = vpop.f32.mrb[0].mxu0
    %v877 = vadd.f32 0.0, %v876
    %v878 = vpop.f32.mrb[0].mxu0
    %v879 = vpop.f32.mrb[0].mxu0
    %v880 = vpop.f32.mrb[0].mxu0
    %881 = vdwg.mxu0
    %v882 = vadd.f32 %v833, %v877
    %v883 = vxor.u32 %v882, 2147483648
    %v884 = vmul.f32 %v883, 1.442695
    %v885 = vpow.pop %v884
    %v886 = vadd.f32 %v885, 1.0
    %v887 = vrcp.pop %v886
    %v888 = vmul.f32 1.0, %v887
    %v889 = vtanh.pop %v882
    %v891 = vrot.slane %v742, 6
    %v893 = vmul.f32 %v888, %v891
    %895 = vrot.lane.b32.xlu0 %v889, 64
    %v896 = vpop.permute.xlu0 %895
    %v898 = vmul.f32 %v888, %v896
    %900 = vrot.lane.b32.xlu0 %v898, 32
    %v901 = vpop.permute.xlu0 %900
    %v903 = vadd.f32 %v893, %v901
    %v904 = vtanh.pop %v903
    %906 = vrot.lane.b32.xlu0 %v904, 64
    %v907 = vpop.permute.xlu0 %906
    %v909 = vmul.f32 %v888, %v907
    %911 = vrot.lane.b32.xlu0 %v909, 32
    %v912 = vpop.permute.xlu0 %911
    %914 = vrot.lane.b32.xlu0 %v827, 64
    %v915 = vpop.permute.xlu0 %914
    %v917 = vsel %vm174, %v912, %v915
    %v918 = vpack.c.bf16 %v917, %v917
    %v920 = vsel %vm257, %v918, 0
    %922 = vmatprep.subr.bf16.mxu0 0
    %923 = vmatpush1.bf16.msra.mxu0 %v45
    %924 = vmatprep.subr.bf16.mxu0 0
    %925 = vmatpush1.bf16.msra.mxu0 %v46
    %926 = vmatprep.subr.bf16.mxu0 0
    %927 = vmatpush1.bf16.msra.mxu0 %v47
    %928 = vmatprep.subr.bf16.mxu0 0
    %929 = vmatpush1.bf16.msra.mxu0 %v48
    %930 = vmatprep.subr.bf16.mxu0 0
    %931 = vmatpush1.bf16.msra.mxu0 0
    %932 = vmatprep.subr.bf16.mxu0 0
    %933 = vmatpush1.bf16.msra.mxu0 0
    %934 = vmatprep.subr.bf16.mxu0 0
    %935 = vmatpush1.bf16.msra.mxu0 0
    %936 = vmatprep.subr.bf16.mxu0 0
    %937 = vmatpush1.bf16.msra.mxu0 0
    %938 = vmatprep.subr.bf16.mxu0 0
    %939 = vmatpush1.bf16.msra.mxu0 0
    %940 = vmatprep.subr.bf16.mxu0 0
    %941 = vmatpush1.bf16.msra.mxu0 0
    %942 = vmatprep.subr.bf16.mxu0 0
    %943 = vmatpush1.bf16.msra.mxu0 0
    %944 = vmatprep.subr.bf16.mxu0 0
    %945 = vmatpush1.bf16.msra.mxu0 0
    %946 = vmatprep.subr.bf16.mxu0 0
    %947 = vmatpush1.bf16.msra.mxu0 0
    %948 = vmatprep.subr.bf16.mxu0 0
    %949 = vmatpush1.bf16.msra.mxu0 0
    %950 = vmatprep.subr.bf16.mxu0 0
    %951 = vmatpush1.bf16.msra.mxu0 0
    %952 = vmatprep.subr.bf16.mxu0 0
    %953 = vmatpush1.bf16.msra.mxu0 0
    %954 = vmatprep.mubr.bf16.mxu0 0
    %955 = vmatmul.mubr.bf16.gmra.mrb[0].mxu0 %v920
    %v956 = vpop.f32.mrb[0].mxu0
    %v957 = vadd.f32 %v63, %v956
    %v958 = vpop.f32.mrb[0].mxu0
    %v959 = vpop.f32.mrb[0].mxu0
    %v960 = vpop.f32.mrb[0].mxu0
    %961 = vdwg.mxu0
    %v962 = vxor.u32 %v957, 2147483648
    %v963 = vmul.f32 %v962, 1.442695
    %v964 = vpow.pop %v963
    %v965 = vadd.f32 %v964, 1.0
    %v966 = vrcp.pop %v965
    %v967 = vmul.f32 1.0, %v966
    %v968 = vtanh.pop %v957
    %v969 = vmul.f32 %v967, %v821
    %971 = vrot.lane.b32.xlu0 %v968, 64
    %v972 = vpop.permute.xlu0 %971
    %v974 = vmul.f32 %v967, %v972
    %976 = vrot.lane.b32.xlu0 %v974, 32
    %v977 = vpop.permute.xlu0 %976
    %v979 = vadd.f32 %v969, %v977
    %v980 = vtanh.pop %v979
    %982 = vrot.lane.b32.xlu0 %v980, 64
    %v983 = vpop.permute.xlu0 %982
    %v985 = vmul.f32 %v967, %v983
    %987 = vrot.lane.b32.xlu0 %v985, 32
    %v988 = vpop.permute.xlu0 %987
    %990 = vst.msk [vmem:[#allocation2 + $0x8] sm:$0x3] %vm333, %v988
    %v991 = vadd.f32 %v113, %v336
    %v992 = vpack.c.bf16 %v909, %v909
    %994 = vrot.lane.b32.xlu0 %v992, 32
    %v995 = vpop.permute.xlu0 %994
    %v997 = vsel %vm174, %v995, 0
    %999 = vmatprep.subr.bf16.mxu0 0
    %1000 = vmatpush1.bf16.msra.mxu0 %v35
    %1001 = vmatprep.subr.bf16.mxu0 0
    %1002 = vmatpush1.bf16.msra.mxu0 %v36
    %1003 = vmatprep.subr.bf16.mxu0 0
    %1004 = vmatpush1.bf16.msra.mxu0 0
    %1005 = vmatprep.subr.bf16.mxu0 0
    %1006 = vmatpush1.bf16.msra.mxu0 0
    %1007 = vmatprep.subr.bf16.mxu0 0
    %1008 = vmatpush1.bf16.msra.mxu0 0
    %1009 = vmatprep.subr.bf16.mxu0 0
    %1010 = vmatpush1.bf16.msra.mxu0 0
    %1011 = vmatprep.subr.bf16.mxu0 0
    %1012 = vmatpush1.bf16.msra.mxu0 0
    %1013 = vmatprep.subr.bf16.mxu0 0
    %1014 = vmatpush1.bf16.msra.mxu0 0
    %1015 = vmatprep.subr.bf16.mxu0 0
    %1016 = vmatpush1.bf16.msra.mxu0 0
    %1017 = vmatprep.subr.bf16.mxu0 0
    %1018 = vmatpush1.bf16.msra.mxu0 0
    %1019 = vmatprep.subr.bf16.mxu0 0
    %1020 = vmatpush1.bf16.msra.mxu0 0
    %1021 = vmatprep.subr.bf16.mxu0 0
    %1022 = vmatpush1.bf16.msra.mxu0 0
    %1023 = vmatprep.subr.bf16.mxu0 0
    %1024 = vmatpush1.bf16.msra.mxu0 0
    %1025 = vmatprep.subr.bf16.mxu0 0
    %1026 = vmatpush1.bf16.msra.mxu0 0
    %1027 = vmatprep.subr.bf16.mxu0 0
    %1028 = vmatpush1.bf16.msra.mxu0 0
    %1029 = vmatprep.subr.bf16.mxu0 0
    %1030 = vmatpush1.bf16.msra.mxu0 0
    %1031 = vmatprep.mubr.bf16.mxu0 0
    %1032 = vmatmul.mubr.bf16.gmra.mrb[0].mxu0 %v997
    %v1033 = vpop.f32.mrb[0].mxu0
    %v1034 = vadd.f32 0.0, %v1033
    %v1035 = vpop.f32.mrb[0].mxu0
    %v1036 = vpop.f32.mrb[0].mxu0
    %v1037 = vpop.f32.mrb[0].mxu0
    %1038 = vdwg.mxu0
    %v1040 = vrot.slane %v1034, 6
    %v1042 = vadd.f32 %v991, %v1040
    %v1043 = vxor.u32 %v1042, 2147483648
    %v1044 = vmul.f32 %v1043, 1.442695
    %v1045 = vpow.pop %v1044
    %v1046 = vadd.f32 %v1045, 1.0
    %v1047 = vrcp.pop %v1046
    %v1048 = vmul.f32 1.0, %v1047
    %v1049 = vtanh.pop %v1042
    %v1051 = vrot.slane %v903, 6
    %v1053 = vmul.f32 %v1048, %v1051
    %1055 = vrot.lane.b32.xlu0 %v1049, 64
    %v1056 = vpop.permute.xlu0 %1055
    %v1058 = vmul.f32 %v1048, %v1056
    %1060 = vrot.lane.b32.xlu0 %v1058, 32
    %v1061 = vpop.permute.xlu0 %1060
    %v1063 = vadd.f32 %v1053, %v1061
    %v1064 = vtanh.pop %v1063
    %1066 = vrot.lane.b32.xlu0 %v1064, 64
    %v1067 = vpop.permute.xlu0 %1066
    %v1069 = vmul.f32 %v1048, %v1067
    %1071 = vrot.lane.b32.xlu0 %v1069, 32
    %v1072 = vpop.permute.xlu0 %1071
    %v1074 = vrot.slane %v985, 6
    %1075 = vrot.lane.b32.xlu0 %v1074, 64
    %v1076 = vpop.permute.xlu0 %1075
    %v1078 = vsel %vm174, %v1072, %v1076
    %v1079 = vpack.c.bf16 %v1078, %v1078
    %v1081 = vrot.slane %v1079, 1
    %v1083 = vsel %vm257, %v1081, 0
    %1085 = vmatprep.subr.bf16.mxu0 0
    %1086 = vmatpush1.bf16.msra.mxu0 %v45
    %1087 = vmatprep.subr.bf16.mxu0 0
    %1088 = vmatpush1.bf16.msra.mxu0 %v46
    %1089 = vmatprep.subr.bf16.mxu0 0
    %1090 = vmatpush1.bf16.msra.mxu0 %v47
    %1091 = vmatprep.subr.bf16.mxu0 0
    %1092 = vmatpush1.bf16.msra.mxu0 %v48
    %1093 = vmatprep.subr.bf16.mxu0 0
    %1094 = vmatpush1.bf16.msra.mxu0 0
    %1095 = vmatprep.subr.bf16.mxu0 0
    %1096 = vmatpush1.bf16.msra.mxu0 0
    %1097 = vmatprep.subr.bf16.mxu0 0
    %1098 = vmatpush1.bf16.msra.mxu0 0
    %1099 = vmatprep.subr.bf16.mxu0 0
    %1100 = vmatpush1.bf16.msra.mxu0 0
    %1101 = vmatprep.subr.bf16.mxu0 0
    %1102 = vmatpush1.bf16.msra.mxu0 0
    %1103 = vmatprep.subr.bf16.mxu0 0
    %1104 = vmatpush1.bf16.msra.mxu0 0
    %1105 = vmatprep.subr.bf16.mxu0 0
    %1106 = vmatpush1.bf16.msra.mxu0 0
    %1107 = vmatprep.subr.bf16.mxu0 0
    %1108 = vmatpush1.bf16.msra.mxu0 0
    %1109 = vmatprep.subr.bf16.mxu0 0
    %1110 = vmatpush1.bf16.msra.mxu0 0
    %1111 = vmatprep.subr.bf16.mxu0 0
    %1112 = vmatpush1.bf16.msra.mxu0 0
    %1113 = vmatprep.subr.bf16.mxu0 0
    %1114 = vmatpush1.bf16.msra.mxu0 0
    %1115 = vmatprep.subr.bf16.mxu0 0
    %1116 = vmatpush1.bf16.msra.mxu0 0
    %1117 = vmatprep.mubr.bf16.mxu0 0
    %1118 = vmatmul.mubr.bf16.gmra.mrb[0].mxu0 %v1083
    %v1119 = vpop.f32.mrb[0].mxu0
    %v1120 = vadd.f32 %v63, %v1119
    %v1121 = vpop.f32.mrb[0].mxu0
    %v1122 = vpop.f32.mrb[0].mxu0
    %v1123 = vpop.f32.mrb[0].mxu0
    %1124 = vdwg.mxu0
    %v1125 = vxor.u32 %v1120, 2147483648
    %v1126 = vmul.f32 %v1125, 1.442695
    %v1127 = vpow.pop %v1126
    %v1128 = vadd.f32 %v1127, 1.0
    %v1129 = vrcp.pop %v1128
    %v1130 = vmul.f32 1.0, %v1129
    %v1131 = vtanh.pop %v1120
    %v1132 = vmul.f32 %v1130, %v979
    %1134 = vrot.lane.b32.xlu0 %v1131, 64
    %v1135 = vpop.permute.xlu0 %1134
    %v1137 = vmul.f32 %v1130, %v1135
    %1139 = vrot.lane.b32.xlu0 %v1137, 32
    %v1140 = vpop.permute.xlu0 %1139
    %v1142 = vadd.f32 %v1132, %v1140
    %v1143 = vtanh.pop %v1142
    %1145 = vrot.lane.b32.xlu0 %v1143, 64
    %v1146 = vpop.permute.xlu0 %1145
    %v1148 = vmul.f32 %v1130, %v1146
    %1150 = vrot.lane.b32.xlu0 %v1148, 32
    %v1151 = vpop.permute.xlu0 %1150
    %1153 = vst.msk [vmem:[#allocation2 + $0xa] sm:$0x3] %vm333, %v1151
    %v1154 = vadd.f32 %v113, %v501
    %v1155 = vpack.c.bf16 %v1069, %v1069
    %v1157 = vrot.slane %v1155, 1
    %1158 = vrot.lane.b32.xlu0 %v1157, 32
    %v1159 = vpop.permute.xlu0 %1158
    %v1161 = vsel %vm174, %v1159, 0
    %1163 = vmatprep.subr.bf16.mxu0 0
    %1164 = vmatpush1.bf16.msra.mxu0 %v35
    %1165 = vmatprep.subr.bf16.mxu0 0
    %1166 = vmatpush1.bf16.msra.mxu0 %v36
    %1167 = vmatprep.subr.bf16.mxu0 0
    %1168 = vmatpush1.bf16.msra.mxu0 0
    %1169 = vmatprep.subr.bf16.mxu0 0
    %1170 = vmatpush1.bf16.msra.mxu0 0
    %1171 = vmatprep.subr.bf16.mxu0 0
    %1172 = vmatpush1.bf16.msra.mxu0 0
    %1173 = vmatprep.subr.bf16.mxu0 0
    %1174 = vmatpush1.bf16.msra.mxu0 0
    %1175 = vmatprep.subr.bf16.mxu0 0
    %1176 = vmatpush1.bf16.msra.mxu0 0
    %1177 = vmatprep.subr.bf16.mxu0 0
    %1178 = vmatpush1.bf16.msra.mxu0 0
    %1179 = vmatprep.subr.bf16.mxu0 0
    %1180 = vmatpush1.bf16.msra.mxu0 0
    %1181 = vmatprep.subr.bf16.mxu0 0
    %1182 = vmatpush1.bf16.msra.mxu0 0
    %1183 = vmatprep.subr.bf16.mxu0 0
    %1184 = vmatpush1.bf16.msra.mxu0 0
    %1185 = vmatprep.subr.bf16.mxu0 0
    %1186 = vmatpush1.bf16.msra.mxu0 0
    %1187 = vmatprep.subr.bf16.mxu0 0
    %1188 = vmatpush1.bf16.msra.mxu0 0
    %1189 = vmatprep.subr.bf16.mxu0 0
    %1190 = vmatpush1.bf16.msra.mxu0 0
    %1191 = vmatprep.subr.bf16.mxu0 0
    %1192 = vmatpush1.bf16.msra.mxu0 0
    %1193 = vmatprep.subr.bf16.mxu0 0
    %1194 = vmatpush1.bf16.msra.mxu0 0
    %1195 = vmatprep.mubr.bf16.mxu0 0
    %1196 = vmatmul.mubr.bf16.gmra.mrb[0].mxu0 %v1161
    %v1197 = vpop.f32.mrb[0].mxu0
    %v1198 = vadd.f32 0.0, %v1197
    %v1199 = vpop.f32.mrb[0].mxu0
    %v1200 = vpop.f32.mrb[0].mxu0
    %v1201 = vpop.f32.mrb[0].mxu0
    %1202 = vdwg.mxu0
    %v1204 = vrot.slane %v1198, 4
    %v1206 = vadd.f32 %v1154, %v1204
    %v1207 = vxor.u32 %v1206, 2147483648
    %v1208 = vmul.f32 %v1207, 1.442695
    %v1209 = vpow.pop %v1208
    %v1210 = vadd.f32 %v1209, 1.0
    %v1211 = vrcp.pop %v1210
    %v1212 = vmul.f32 1.0, %v1211
    %v1213 = vtanh.pop %v1206
    %v1215 = vrot.slane %v1063, 6
    %v1217 = vmul.f32 %v1212, %v1215
    %1219 = vrot.lane.b32.xlu0 %v1213, 64
    %v1220 = vpop.permute.xlu0 %1219
    %v1222 = vmul.f32 %v1212, %v1220
    %1224 = vrot.lane.b32.xlu0 %v1222, 32
    %v1225 = vpop.permute.xlu0 %1224
    %v1227 = vadd.f32 %v1217, %v1225
    %v1228 = vtanh.pop %v1227
    %1230 = vrot.lane.b32.xlu0 %v1228, 64
    %v1231 = vpop.permute.xlu0 %1230
    %v1233 = vmul.f32 %v1212, %v1231
    %1235 = vrot.lane.b32.xlu0 %v1233, 32
    %v1236 = vpop.permute.xlu0 %1235
    %v1238 = vrot.slane %v1148, 4
    %1239 = vrot.lane.b32.xlu0 %v1238, 64
    %v1240 = vpop.permute.xlu0 %1239
    %v1242 = vsel %vm174, %v1236, %v1240
    %v1243 = vpack.c.bf16 %v1242, %v1242
    %v1245 = vrot.slane %v1243, 2
    %v1247 = vsel %vm257, %v1245, 0
    %1249 = vmatprep.subr.bf16.mxu0 0
    %1250 = vmatpush1.bf16.msra.mxu0 %v45
    %1251 = vmatprep.subr.bf16.mxu0 0
    %1252 = vmatpush1.bf16.msra.mxu0 %v46
    %1253 = vmatprep.subr.bf16.mxu0 0
    %1254 = vmatpush1.bf16.msra.mxu0 %v47
    %1255 = vmatprep.subr.bf16.mxu0 0
    %1256 = vmatpush1.bf16.msra.mxu0 %v48
    %1257 = vmatprep.subr.bf16.mxu0 0
    %1258 = vmatpush1.bf16.msra.mxu0 0
    %1259 = vmatprep.subr.bf16.mxu0 0
    %1260 = vmatpush1.bf16.msra.mxu0 0
    %1261 = vmatprep.subr.bf16.mxu0 0
    %1262 = vmatpush1.bf16.msra.mxu0 0
    %1263 = vmatprep.subr.bf16.mxu0 0
    %1264 = vmatpush1.bf16.msra.mxu0 0
    %1265 = vmatprep.subr.bf16.mxu0 0
    %1266 = vmatpush1.bf16.msra.mxu0 0
    %1267 = vmatprep.subr.bf16.mxu0 0
    %1268 = vmatpush1.bf16.msra.mxu0 0
    %1269 = vmatprep.subr.bf16.mxu0 0
    %1270 = vmatpush1.bf16.msra.mxu0 0
    %1271 = vmatprep.subr.bf16.mxu0 0
    %1272 = vmatpush1.bf16.msra.mxu0 0
    %1273 = vmatprep.subr.bf16.mxu0 0
    %1274 = vmatpush1.bf16.msra.mxu0 0
    %1275 = vmatprep.subr.bf16.mxu0 0
    %1276 = vmatpush1.bf16.msra.mxu0 0
    %1277 = vmatprep.subr.bf16.mxu0 0
    %1278 = vmatpush1.bf16.msra.mxu0 0
    %1279 = vmatprep.subr.bf16.mxu0 0
    %1280 = vmatpush1.bf16.msra.mxu0 0
    %1281 = vmatprep.mubr.bf16.mxu0 0
    %1282 = vmatmul.mubr.bf16.gmra.mrb[0].mxu0 %v1247
    %v1283 = vpop.f32.mrb[0].mxu0
    %v1284 = vadd.f32 %v63, %v1283
    %v1285 = vpop.f32.mrb[0].mxu0
    %v1286 = vpop.f32.mrb[0].mxu0
    %v1287 = vpop.f32.mrb[0].mxu0
    %1288 = vdwg.mxu0
    %v1289 = vxor.u32 %v1284, 2147483648
    %v1290 = vmul.f32 %v1289, 1.442695
    %v1291 = vpow.pop %v1290
    %v1292 = vadd.f32 %v1291, 1.0
    %v1293 = vrcp.pop %v1292
    %v1294 = vmul.f32 1.0, %v1293
    %v1295 = vtanh.pop %v1284
    %v1296 = vmul.f32 %v1294, %v1142
    %1298 = vrot.lane.b32.xlu0 %v1295, 64
    %v1299 = vpop.permute.xlu0 %1298
    %v1301 = vmul.f32 %v1294, %v1299
    %1303 = vrot.lane.b32.xlu0 %v1301, 32
    %v1304 = vpop.permute.xlu0 %1303
    %v1306 = vadd.f32 %v1296, %v1304
    %v1307 = vtanh.pop %v1306
    %1309 = vrot.lane.b32.xlu0 %v1307, 64
    %v1310 = vpop.permute.xlu0 %1309
    %v1312 = vmul.f32 %v1294, %v1310
    %1314 = vrot.lane.b32.xlu0 %v1312, 32
    %v1315 = vpop.permute.xlu0 %1314
    %1317 = vst.msk [vmem:[#allocation2 + $0xc] sm:$0x3] %vm333, %v1315
    %v1318 = vadd.f32 %v113, %v667
    %v1319 = vpack.c.bf16 %v1233, %v1233
    %v1321 = vrot.slane %v1319, 2
    %1322 = vrot.lane.b32.xlu0 %v1321, 32
    %v1323 = vpop.permute.xlu0 %1322
    %v1325 = vsel %vm174, %v1323, 0
    %1327 = vmatprep.subr.bf16.mxu0 0
    %1328 = vmatpush1.bf16.msra.mxu0 %v35
    %1329 = vmatprep.subr.bf16.mxu0 0
    %1330 = vmatpush1.bf16.msra.mxu0 %v36
    %1331 = vmatprep.subr.bf16.mxu0 0
    %1332 = vmatpush1.bf16.msra.mxu0 0
    %1333 = vmatprep.subr.bf16.mxu0 0
    %1334 = vmatpush1.bf16.msra.mxu0 0
    %1335 = vmatprep.subr.bf16.mxu0 0
    %1336 = vmatpush1.bf16.msra.mxu0 0
    %1337 = vmatprep.subr.bf16.mxu0 0
    %1338 = vmatpush1.bf16.msra.mxu0 0
    %1339 = vmatprep.subr.bf16.mxu0 0
    %1340 = vmatpush1.bf16.msra.mxu0 0
    %1341 = vmatprep.subr.bf16.mxu0 0
    %1342 = vmatpush1.bf16.msra.mxu0 0
    %1343 = vmatprep.subr.bf16.mxu0 0
    %1344 = vmatpush1.bf16.msra.mxu0 0
    %1345 = vmatprep.subr.bf16.mxu0 0
    %1346 = vmatpush1.bf16.msra.mxu0 0
    %1347 = vmatprep.subr.bf16.mxu0 0
    %1348 = vmatpush1.bf16.msra.mxu0 0
    %1349 = vmatprep.subr.bf16.mxu0 0
    %1350 = vmatpush1.bf16.msra.mxu0 0
    %1351 = vmatprep.subr.bf16.mxu0 0
    %1352 = vmatpush1.bf16.msra.mxu0 0
    %1353 = vmatprep.subr.bf16.mxu0 0
    %1354 = vmatpush1.bf16.msra.mxu0 0
    %1355 = vmatprep.subr.bf16.mxu0 0
    %1356 = vmatpush1.bf16.msra.mxu0 0
    %1357 = vmatprep.subr.bf16.mxu0 0
    %1358 = vmatpush1.bf16.msra.mxu0 0
    %1359 = vmatprep.mubr.bf16.mxu0 0
    %1360 = vmatmul.mubr.bf16.gmra.mrb[0].mxu0 %v1325
    %v1361 = vpop.f32.mrb[0].mxu0
    %v1362 = vadd.f32 0.0, %v1361
    %v1363 = vpop.f32.mrb[0].mxu0
    %v1364 = vpop.f32.mrb[0].mxu0
    %v1365 = vpop.f32.mrb[0].mxu0
    %1366 = vdwg.mxu0
    %v1368 = vrot.slane %v1362, 2
    %v1370 = vadd.f32 %v1318, %v1368
    %v1371 = vxor.u32 %v1370, 2147483648
    %v1372 = vmul.f32 %v1371, 1.442695
    %v1373 = vpow.pop %v1372
    %v1374 = vadd.f32 %v1373, 1.0
    %v1375 = vrcp.pop %v1374
    %v1376 = vmul.f32 1.0, %v1375
    %v1377 = vtanh.pop %v1370
    %v1379 = vrot.slane %v1227, 6
    %v1381 = vmul.f32 %v1376, %v1379
    %1383 = vrot.lane.b32.xlu0 %v1377, 64
    %v1384 = vpop.permute.xlu0 %1383
    %v1386 = vmul.f32 %v1376, %v1384
    %1388 = vrot.lane.b32.xlu0 %v1386, 32
    %v1389 = vpop.permute.xlu0 %1388
    %v1391 = vadd.f32 %v1381, %v1389
    %v1392 = vtanh.pop %v1391
    %1394 = vrot.lane.b32.xlu0 %v1392, 64
    %v1395 = vpop.permute.xlu0 %1394
    %v1397 = vmul.f32 %v1376, %v1395
    %1399 = vrot.lane.b32.xlu0 %v1397, 32
    %v1400 = vpop.permute.xlu0 %1399
    %v1402 = vrot.slane %v1312, 2
    %1403 = vrot.lane.b32.xlu0 %v1402, 64
    %v1404 = vpop.permute.xlu0 %1403
    %v1406 = vsel %vm174, %v1400, %v1404
    %v1407 = vpack.c.bf16 %v1406, %v1406
    %v1409 = vrot.slane %v1407, 3
    %v1411 = vsel %vm257, %v1409, 0
    %1413 = vmatprep.subr.bf16.mxu0 0
    %1414 = vmatpush1.bf16.msra.mxu0 %v45
    %1415 = vmatprep.subr.bf16.mxu0 0
    %1416 = vmatpush1.bf16.msra.mxu0 %v46
    %1417 = vmatprep.subr.bf16.mxu0 0
    %1418 = vmatpush1.bf16.msra.mxu0 %v47
    %1419 = vmatprep.subr.bf16.mxu0 0
    %1420 = vmatpush1.bf16.msra.mxu0 %v48
    %1421 = vmatprep.subr.bf16.mxu0 0
    %1422 = vmatpush1.bf16.msra.mxu0 0
    %1423 = vmatprep.subr.bf16.mxu0 0
    %1424 = vmatpush1.bf16.msra.mxu0 0
    %1425 = vmatprep.subr.bf16.mxu0 0
    %1426 = vmatpush1.bf16.msra.mxu0 0
    %1427 = vmatprep.subr.bf16.mxu0 0
    %1428 = vmatpush1.bf16.msra.mxu0 0
    %1429 = vmatprep.subr.bf16.mxu0 0
    %1430 = vmatpush1.bf16.msra.mxu0 0
    %1431 = vmatprep.subr.bf16.mxu0 0
    %1432 = vmatpush1.bf16.msra.mxu0 0
    %1433 = vmatprep.subr.bf16.mxu0 0
    %1434 = vmatpush1.bf16.msra.mxu0 0
    %1435 = vmatprep.subr.bf16.mxu0 0
    %1436 = vmatpush1.bf16.msra.mxu0 0
    %1437 = vmatprep.subr.bf16.mxu0 0
    %1438 = vmatpush1.bf16.msra.mxu0 0
    %1439 = vmatprep.subr.bf16.mxu0 0
    %1440 = vmatpush1.bf16.msra.mxu0 0
    %1441 = vmatprep.subr.bf16.mxu0 0
    %1442 = vmatpush1.bf16.msra.mxu0 0
    %1443 = vmatprep.subr.bf16.mxu0 0
    %1444 = vmatpush1.bf16.msra.mxu0 0
    %1445 = vmatprep.mubr.bf16.mxu0 0
    %1446 = vmatmul.mubr.bf16.gmra.mrb[0].mxu0 %v1411
    %v1447 = vpop.f32.mrb[0].mxu0
    %v1448 = vadd.f32 %v63, %v1447
    %v1449 = vpop.f32.mrb[0].mxu0
    %v1450 = vpop.f32.mrb[0].mxu0
    %v1451 = vpop.f32.mrb[0].mxu0
    %1452 = vdwg.mxu0
    %v1453 = vxor.u32 %v1448, 2147483648
    %v1454 = vmul.f32 %v1453, 1.442695
    %v1455 = vpow.pop %v1454
    %v1456 = vadd.f32 %v1455, 1.0
    %v1457 = vrcp.pop %v1456
    %v1458 = vmul.f32 1.0, %v1457
    %v1459 = vtanh.pop %v1448
    %v1460 = vmul.f32 %v1458, %v1306
    %1462 = vrot.lane.b32.xlu0 %v1459, 64
    %v1463 = vpop.permute.xlu0 %1462
    %v1465 = vmul.f32 %v1458, %v1463
    %1467 = vrot.lane.b32.xlu0 %v1465, 32
    %v1468 = vpop.permute.xlu0 %1467
    %v1470 = vadd.f32 %v1460, %v1468
    %v1471 = vtanh.pop %v1470
    %1473 = vrot.lane.b32.xlu0 %v1471, 64
    %v1474 = vpop.permute.xlu0 %1473
    %v1476 = vmul.f32 %v1458, %v1474
    %1478 = vrot.lane.b32.xlu0 %v1476, 32
    %v1479 = vpop.permute.xlu0 %1478
    %1481 = vst.msk [vmem:[#allocation2 + $0xe] sm:$0x3] %vm333, %v1479
    %v1482 = vld [vmem:[#allocation2] sm:$0xff]
    %v1483 = vld [vmem:[#allocation2 + $0x8] sm:$0xff]
    %v1484 = vpack.c.bf16 %v1483, %v1482
    %v1486 = vsel %vm174, %v1484, 0
    %1488 = vmatprep.subr.bf16.mxu0 0
    %1489 = vmatpush1.bf16.msra.mxu0 %v53
    %1490 = vmatprep.subr.bf16.mxu0 0
    %1491 = vmatpush1.bf16.msra.mxu0 %v54
    %1492 = vmatprep.subr.bf16.mxu0 0
    %1493 = vmatpush1.bf16.msra.mxu0 0
    %1494 = vmatprep.subr.bf16.mxu0 0
    %1495 = vmatpush1.bf16.msra.mxu0 0
    %1496 = vmatprep.subr.bf16.mxu0 0
    %1497 = vmatpush1.bf16.msra.mxu0 0
    %1498 = vmatprep.subr.bf16.mxu0 0
    %1499 = vmatpush1.bf16.msra.mxu0 0
    %1500 = vmatprep.subr.bf16.mxu0 0
    %1501 = vmatpush1.bf16.msra.mxu0 0
    %1502 = vmatprep.subr.bf16.mxu0 0
    %1503 = vmatpush1.bf16.msra.mxu0 0
    %1504 = vmatprep.subr.bf16.mxu0 0
    %1505 = vmatpush1.bf16.msra.mxu0 0
    %1506 = vmatprep.subr.bf16.mxu0 0
    %1507 = vmatpush1.bf16.msra.mxu0 0
    %1508 = vmatprep.subr.bf16.mxu0 0
    %1509 = vmatpush1.bf16.msra.mxu0 0
    %1510 = vmatprep.subr.bf16.mxu0 0
    %1511 = vmatpush1.bf16.msra.mxu0 0
    %1512 = vmatprep.subr.bf16.mxu0 0
    %1513 = vmatpush1.bf16.msra.mxu0 0
    %1514 = vmatprep.subr.bf16.mxu0 0
    %1515 = vmatpush1.bf16.msra.mxu0 0
    %1516 = vmatprep.subr.bf16.mxu0 0
    %1517 = vmatpush1.bf16.msra.mxu0 0
    %1518 = vmatprep.subr.bf16.mxu0 0
    %1519 = vmatpush1.bf16.msra.mxu0 0
    %1520 = vmatprep.mubr.bf16.mxu0 0
    %1521 = vmatmul.mubr.bf16.gmra.mrb[0].mxu0 %v1486
    %v1522 = vpop.f32.mrb[0].mxu0
    %v1523 = vadd.f32 %v67, %v1522
    %v1524 = vpop.f32.mrb[0].mxu0
    %v1525 = vpop.f32.mrb[0].mxu0
    %v1526 = vadd.f32 %v67, %v1525
    %v1527 = vpop.f32.mrb[0].mxu0
    %1528 = vdwg.mxu0
    %1529 = vst [vmem:[%s5] sm:$0xff] %v1523
    %1530 = vst [vmem:[%s5 + $0x8] sm:$0xff] %v1526
    %vm1531 = vcmask 261126
    %1532 = vst.msk [vmem:[#allocation3 - $0x6] sm:$0xc0] %vm1531, %v1400
    %1534 = vrot.lane.b32.xlu0 %v1391, 96
    %v1535 = vpop.permute.xlu0 %1534
    %1537 = vst.msk [vmem:[#allocation5 - $0x6] sm:$0xc0] %vm1531, %v1535
    %s1538 = scalar_lea.vmem [#allocation3], 2
    %1539 = vst.msk [vmem:[%s1538] sm:$0x3] %vm333, %v1479
    %1541 = vrot.lane.b32.xlu0 %v1470, 96
    %v1542 = vpop.permute.xlu0 %1541
    %s1544 = scalar_lea.vmem [#allocation5], 2
    %1545 = vst.msk [vmem:[%s1544] sm:$0x3] %vm333, %v1542
    // Predicated region
    $region22: #{decoder_forward.1} parent=1 // pred_check
      _
    $region23: #{decoder_forward.1} parent=1 // pred_check_branch
      %1547 = sbr.rel (0) target = $region25
    $region24: #{decoder_forward.1} parent=1 // pred_region
      _
    $region25: #{decoder_forward.1} parent=1 // pred_fallthru
      _
    // Predicated region
    $region26: #{decoder_forward.1} parent=1 // pred_check
      _
    $region27: #{decoder_forward.1} parent=1 // pred_check_branch
      %1549 = sbr.rel (0) target = $region29
    $region28: #{decoder_forward.1} parent=1 // pred_region
      %s1551 = ssub.s32 64, 64
      %1552 = vsyncadd [#allocation4], %s1551
      %s1553 = sshll.u32 [#allocation3], 4
      %s1554 = int_to_ptr.vmem [resolvable:$true] %s1553
      %1559 = dma.vmem_to_hbm [thread:$0]  %s1554, 64, %s6, [#allocation4], 32, 32, 2
    $region29: #{decoder_forward.1} parent=1 // pred_fallthru
      _
    // Predicated region
    $region30: #{decoder_forward.1} parent=1 // pred_check
      _
    $region31: #{decoder_forward.1} parent=1 // pred_check_branch
      %1561 = sbr.rel (0) target = $region33
    $region32: #{decoder_forward.1} parent=1 // pred_region
      %s1563 = ssub.s32 64, 64
      %1564 = vsyncadd [#allocation6], %s1563
      %s1565 = sshll.u32 [#allocation5], 4
      %s1566 = int_to_ptr.vmem [resolvable:$true] %s1565
      %1571 = dma.vmem_to_hbm [thread:$0]  %s1566, 64, %s7, [#allocation6], 32, 32, 2
    $region33: #{decoder_forward.1} parent=1 // pred_fallthru
      _
    // Predicated region
    $region34: #{decoder_forward.1} parent=1 // pred_check
      _
    $region35: #{decoder_forward.1} parent=1 // pred_check_branch
      %1573 = sbr.rel (0) target = $region37
    $region36: #{decoder_forward.1} parent=1 // pred_region
      _
    $region37: #{decoder_forward.1} parent=1 // pred_fallthru
      _
    // Predicated region
    $region38: #{decoder_forward.1} parent=1 // pred_check
      _
    $region39: #{decoder_forward.1} parent=1 // pred_check_branch
      %1575 = sbr.rel (0) target = $region41
    $region40: #{decoder_forward.1} parent=1 // pred_region
      %1576 = dma.done [#allocation4], 64
    $region41: #{decoder_forward.1} parent=1 // pred_fallthru
      _
    // Predicated region
    $region42: #{decoder_forward.1} parent=1 // pred_check
      _
    $region43: #{decoder_forward.1} parent=1 // pred_check_branch
      %1578 = sbr.rel (0) target = $region45
    $region44: #{decoder_forward.1} parent=1 // pred_region
      %1579 = dma.done [#allocation6], 64
    $region45: #{decoder_forward.1} parent=1 // pred_fallthru
      _
    %1580 = vsyncpa [#allocation4], 1
    %1581 = vsyncpa [#allocation6], 1

</llo_original>
